<compile_context>
chip_gen: v7x
topology: tpu7x:2x2x1
jax: 0.10.0
libtpu: 0.0.40
codegen_flags: <defaults>
</compile_context>

<pallas_src>
import functools

import jax
import jax.numpy as jnp
from jax import lax
from jax.experimental import pallas as pl
from jax.experimental.pallas import tpu as pltpu


def _wgb_kernel(xw_ref, w_ref, b_ref, out_ref, *, TH, W, Cin, Cout2):
    # xw_ref : (1, TH+2, W+2, Cin)  bf16  zero-padded row window of concat(x1, x2)
    # w_ref  : (3, 3*Cin, Cout2)    bf16  fused conv weights, kw folded into K
    # b_ref  : (1, Cout2)           f32   fused bias [b1 | b2]
    # out_ref: (1, TH, W, Cout2)    f32   concat(x1*sig(conv1), x2*sig(conv2))
    xw = xw_ref[0]                                     # (TH+2, W+2, Cin) bf16

    acc = jnp.zeros((TH * W, Cout2), jnp.float32)
    for kh in range(3):                                # 3 matmuls, K = 3*Cin
        rows = xw[kh:kh + TH]                          # outer-dim slice (free addressing)
        patch = jnp.concatenate(                       # channel order kw*Cin + c
            [rows[:, 0:W], rows[:, 1:W + 1], rows[:, 2:W + 2]], axis=-1
        ).reshape(TH * W, 3 * Cin)
        acc = acc + jnp.dot(patch, w_ref[kh],
                            preferred_element_type=jnp.float32)

    gate = jax.nn.sigmoid(acc + b_ref[...])            # f32 epilogue

    # Interior of the padded window is exactly [x1 | x2] (Cin == 2*Cout):
    # gate against it directly instead of re-DMAing x1/x2.
    x = xw[1:TH + 1, 1:W + 1, :].reshape(TH * W, Cin).astype(jnp.float32)

    # Single full-width store; [y1 | y2] channel order matches the reference.
    # (Lane-dense relayout of the output was considered but left out per the
    # review: only worth it if a trace shows writeback dominating.)
    out_ref[0] = (x * gate).reshape(TH, W, Cout2).astype(out_ref.dtype)


def _pick_row_tile(H, target=128):
    """Largest row tile <= target that divides H (H itself if H <= target)."""
    if H <= target:
        return H
    for th in range(target, 0, -1):
        if H % th == 0:
            return th
    return H


def wgb_forward(x1_nchw, x2_nchw, w1, b1, w2, b2, *, row_tile=None):
    """WGB forward pass.

    x1_nchw, x2_nchw : (N, C, H, W) float32  (PyTorch layout)
    w1, w2           : (Cout, Cin, 3, 3)     (PyTorch OIHW; Cin = 2*C, Cout = C)
    b1, b2           : (Cout,)
    returns          : (N, 2*Cout, H, W) float32
    """
    N, C, H, W = x1_nchw.shape
    Cout, Cin = w1.shape[0], w1.shape[1]
    assert Cout == C and Cin == 2 * C, "gating requires outchannel == C, inchannel == 2*C"
    Cout2 = 2 * Cout                                   # == Cin

    TH = row_tile if row_tile is not None else _pick_row_tile(H)
    assert H % TH == 0
    nt = H // TH

    # ---- NCHW -> NHWC glue + zero padding (layout plumbing only) -------------
    # TODO(synk): if the surrounding model can stay NHWC, these transposes (and
    # the final one) disappear; the op is memory-bound, so removing wrapper
    # passes is worth more than any in-kernel micro-opt.
    x1 = jnp.transpose(x1_nchw, (0, 2, 3, 1))
    x2 = jnp.transpose(x2_nchw, (0, 2, 3, 1))
    xcat = jnp.concatenate([x1, x2], axis=-1)                  # (N, H, W, Cin) = [x1|x2]
    xpad = jnp.pad(xcat, ((0, 0), (1, 1), (1, 1), (0, 0)))     # (N, H+2, W+2, Cin)

    # Row windows with a 2-row halo, flattened to 4-D: (N*nt, TH+2, W+2, Cin).
    # For nt == 1 (small images) this is xpad itself -- no data duplication.
    if nt == 1:
        xwin = xpad
    else:
        xwin = jnp.stack(
            [xpad[:, t * TH:t * TH + TH + 2] for t in range(nt)], axis=1
        ).reshape(N * nt, TH + 2, W + 2, Cin)
    xwin = xwin.astype(jnp.bfloat16)        # bf16 MXU operands; halves DMA bytes

    # ---- Fuse the two convs: [w1 | w2] along Cout, fold kw into K ------------
    w1_hwio = jnp.transpose(w1, (2, 3, 1, 0))                  # (3, 3, Cin, Cout)
    w2_hwio = jnp.transpose(w2, (2, 3, 1, 0))
    w_fused = jnp.concatenate([w1_hwio, w2_hwio], axis=-1)     # (3, 3, Cin, 2*Cout)
    w_fused = w_fused.reshape(3, 3 * Cin, Cout2).astype(jnp.bfloat16)
    b_fused = jnp.concatenate([b1, b2]).reshape(1, Cout2).astype(jnp.float32)

    kernel = functools.partial(_wgb_kernel, TH=TH, W=W, Cin=Cin, Cout2=Cout2)

    out_nhwc = pl.pallas_call(
        kernel,
        out_shape=jax.ShapeDtypeStruct((N, H, W, Cout2), x1_nchw.dtype),
        grid_spec=pltpu.PrefetchScalarGridSpec(
            num_scalar_prefetch=0,
            grid=(N, nt),
            in_specs=[
                # Activation row window (halo already baked in by the wrapper).
                pl.BlockSpec((1, TH + 2, W + 2, Cin),
                             lambda n, t: (n * nt + t, 0, 0, 0)),
                # Weights / bias: constant index_map -> fetched once and kept
                # VMEM-resident across grid steps (default buffering on purpose).
                pl.BlockSpec((3, 3 * Cin, Cout2), lambda n, t: (0, 0, 0)),
                pl.BlockSpec((1, Cout2), lambda n, t: (0, 0)),
            ],
            out_specs=pl.BlockSpec((1, TH, W, Cout2),
                                   lambda n, t: (n, t, 0, 0)),
        ),
        compiler_params=pltpu.CompilerParams(
            dimension_semantics=("parallel", "parallel")),
    )(xwin, w_fused, b_fused)

    # NHWC -> NCHW
    return jnp.transpose(out_nhwc, (0, 3, 1, 2))


def _reference_wgb(x1, x2, w1, b1, w2, b2):
    """Plain-JAX f32 reference (mirrors the PyTorch forward), NCHW."""
    x = jnp.concatenate([x1, x2], axis=1)
    dn = lax.conv_dimension_numbers(x.shape, w1.shape, ("NCHW", "OIHW", "NCHW"))
    c1 = lax.conv_general_dilated(x, w1, (1, 1), ((1, 1), (1, 1)),
                                  dimension_numbers=dn) + b1[None, :, None, None]
    c2 = lax.conv_general_dilated(x, w2, (1, 1), ((1, 1), (1, 1)),
                                  dimension_numbers=dn) + b2[None, :, None, None]
    y1 = x1 * jax.nn.sigmoid(c1)
    y2 = x2 * jax.nn.sigmoid(c2)
    return jnp.concatenate([y1, y2], axis=1)


if __name__ == "__main__":
    # Small shapes consistent with the module: x1, x2 have C channels each,
    # inchannel = 2*C, outchannel = C.
    N, C, H, W = 2, 4, 16, 16
    Cin, Cout = 2 * C, C

    key = jax.random.PRNGKey(0)
    k1, k2, k3, k4, k5, k6 = jax.random.split(key, 6)

    x1 = jax.random.normal(k1, (N, C, H, W), jnp.float32)
    x2 = jax.random.normal(k2, (N, C, H, W), jnp.float32)

    # Deterministic parameter init (kaiming-uniform-like bounds).
    fan_in = Cin * 3 * 3
    bound = 1.0 / (fan_in ** 0.5)
    w1 = jax.random.uniform(k3, (Cout, Cin, 3, 3), jnp.float32, -bound, bound)
    b1 = jax.random.uniform(k4, (Cout,), jnp.float32, -bound, bound)
    w2 = jax.random.uniform(k5, (Cout, Cin, 3, 3), jnp.float32, -bound, bound)
    b2 = jax.random.uniform(k6, (Cout,), jnp.float32, -bound, bound)

    out = jax.jit(wgb_forward)(x1, x2, w1, b1, w2, b2)
    jax.block_until_ready(out)

    ref = _reference_wgb(x1, x2, w1, b1, w2, b2)
    assert out.shape == (N, 2 * C, H, W)
    # Tolerance is loosened vs. the pure-f32 reference because the MXU operands
    # are bf16 (accumulation/bias/sigmoid/gating stay f32, keeping error small).
    assert jnp.allclose(out, ref, atol=3e-2, rtol=3e-2), "mismatch vs reference"

    print("KERNEL_OK")
</pallas_src>

<mosaic_0001>
module attributes {stable_mosaic.version = 11 : i64} {
  func.func @_wgb_kernel(%arg0: i32, %arg1: i32, %arg2: memref<1x18x18x8xbf16, #tpu.memory_space<vmem>>, %arg3: memref<3x24x8xbf16, #tpu.memory_space<vmem>>, %arg4: memref<1x8xf32, #tpu.memory_space<vmem>>, %arg5: memref<1x16x16x8xf32, #tpu.memory_space<vmem>>) attributes {dimension_semantics = [#tpu.dimension_semantics<parallel>, #tpu.dimension_semantics<parallel>], iteration_bounds = array<i64: 2, 1>, scalar_prefetch = 0 : i64, scratch_operands = 0 : i64, tpu.core_type = #tpu.core_type<tc>, window_params = [{transform_indices = @transform_0, window_bounds = array<i64: 1, 18, 18, 8>}, {pipeline_mode = #tpu.pipeline_mode<synchronous>, transform_indices = @transform_1, window_bounds = array<i64: 3, 24, 8>}, {pipeline_mode = #tpu.pipeline_mode<synchronous>, transform_indices = @transform_2, window_bounds = array<i64: 1, 8>}, {transform_indices = @transform_3, window_bounds = array<i64: 1, 16, 16, 8>}]} {
    %c0 = arith.constant 0 : index
    %c0_0 = arith.constant 0 : index
    %c0_1 = arith.constant 0 : index
    %c0_2 = arith.constant 0 : index
    %0 = vector.load %arg2[%c0, %c0_0, %c0_1, %c0_2] : memref<1x18x18x8xbf16, #tpu.memory_space<vmem>>, vector<1x18x18x8xbf16>
    %1 = vector.shape_cast %0 : vector<1x18x18x8xbf16> to vector<18x18x8xbf16>
    %cst = arith.constant 0.000000e+00 : f32
    %2 = vector.broadcast %cst : f32 to vector<256x8xf32>
    %3 = vector.extract_strided_slice %1 {offsets = [0, 0, 0], sizes = [16, 18, 8], strides = [1, 1, 1]} : vector<18x18x8xbf16> to vector<16x18x8xbf16>
    %4 = vector.extract_strided_slice %3 {offsets = [0, 0, 0], sizes = [16, 16, 8], strides = [1, 1, 1]} : vector<16x18x8xbf16> to vector<16x16x8xbf16>
    %5 = vector.extract_strided_slice %3 {offsets = [0, 1, 0], sizes = [16, 16, 8], strides = [1, 1, 1]} : vector<16x18x8xbf16> to vector<16x16x8xbf16>
    %6 = vector.extract_strided_slice %3 {offsets = [0, 2, 0], sizes = [16, 16, 8], strides = [1, 1, 1]} : vector<16x18x8xbf16> to vector<16x16x8xbf16>
    %7 = tpu.concatenate %4, %5, %6 in 2 : vector<16x16x8xbf16>, vector<16x16x8xbf16>, vector<16x16x8xbf16> -> vector<16x16x24xbf16>
    %8 = vector.shape_cast %7 : vector<16x16x24xbf16> to vector<256x24xbf16>
    %c0_3 = arith.constant 0 : index
    %c0_4 = arith.constant 0 : index
    %c0_5 = arith.constant 0 : index
    %9 = vector.load %arg3[%c0_3, %c0_4, %c0_5] : memref<3x24x8xbf16, #tpu.memory_space<vmem>>, vector<1x24x8xbf16>
    %10 = vector.shape_cast %9 : vector<1x24x8xbf16> to vector<24x8xbf16>
    %cst_6 = arith.constant dense<0.000000e+00> : vector<256x8xf32>
    %11 = tpu.matmul %8, %10, %cst_6 {dimension_numbers = #tpu.dot_dimension_numbers<[1], [0], [0], [1], [0, 0, 1, 1], [], []>} : vector<256x24xbf16>, vector<24x8xbf16>, vector<256x8xf32> -> vector<256x8xf32>
    %12 = arith.addf %2, %11 : vector<256x8xf32>
    %13 = vector.extract_strided_slice %1 {offsets = [1, 0, 0], sizes = [16, 18, 8], strides = [1, 1, 1]} : vector<18x18x8xbf16> to vector<16x18x8xbf16>
    %14 = vector.extract_strided_slice %13 {offsets = [0, 0, 0], sizes = [16, 16, 8], strides = [1, 1, 1]} : vector<16x18x8xbf16> to vector<16x16x8xbf16>
    %15 = vector.extract_strided_slice %13 {offsets = [0, 1, 0], sizes = [16, 16, 8], strides = [1, 1, 1]} : vector<16x18x8xbf16> to vector<16x16x8xbf16>
    %16 = vector.extract_strided_slice %13 {offsets = [0, 2, 0], sizes = [16, 16, 8], strides = [1, 1, 1]} : vector<16x18x8xbf16> to vector<16x16x8xbf16>
    %17 = tpu.concatenate %14, %15, %16 in 2 : vector<16x16x8xbf16>, vector<16x16x8xbf16>, vector<16x16x8xbf16> -> vector<16x16x24xbf16>
    %18 = vector.shape_cast %17 : vector<16x16x24xbf16> to vector<256x24xbf16>
    %c1 = arith.constant 1 : index
    %c0_7 = arith.constant 0 : index
    %c0_8 = arith.constant 0 : index
    %19 = vector.load %arg3[%c1, %c0_7, %c0_8] : memref<3x24x8xbf16, #tpu.memory_space<vmem>>, vector<1x24x8xbf16>
    %20 = vector.shape_cast %19 : vector<1x24x8xbf16> to vector<24x8xbf16>
    %cst_9 = arith.constant dense<0.000000e+00> : vector<256x8xf32>
    %21 = tpu.matmul %18, %20, %cst_9 {dimension_numbers = #tpu.dot_dimension_numbers<[1], [0], [0], [1], [0, 0, 1, 1], [], []>} : vector<256x24xbf16>, vector<24x8xbf16>, vector<256x8xf32> -> vector<256x8xf32>
    %22 = arith.addf %12, %21 : vector<256x8xf32>
    %23 = vector.extract_strided_slice %1 {offsets = [2, 0, 0], sizes = [16, 18, 8], strides = [1, 1, 1]} : vector<18x18x8xbf16> to vector<16x18x8xbf16>
    %24 = vector.extract_strided_slice %23 {offsets = [0, 0, 0], sizes = [16, 16, 8], strides = [1, 1, 1]} : vector<16x18x8xbf16> to vector<16x16x8xbf16>
    %25 = vector.extract_strided_slice %23 {offsets = [0, 1, 0], sizes = [16, 16, 8], strides = [1, 1, 1]} : vector<16x18x8xbf16> to vector<16x16x8xbf16>
    %26 = vector.extract_strided_slice %23 {offsets = [0, 2, 0], sizes = [16, 16, 8], strides = [1, 1, 1]} : vector<16x18x8xbf16> to vector<16x16x8xbf16>
    %27 = tpu.concatenate %24, %25, %26 in 2 : vector<16x16x8xbf16>, vector<16x16x8xbf16>, vector<16x16x8xbf16> -> vector<16x16x24xbf16>
    %28 = vector.shape_cast %27 : vector<16x16x24xbf16> to vector<256x24xbf16>
    %c2 = arith.constant 2 : index
    %c0_10 = arith.constant 0 : index
    %c0_11 = arith.constant 0 : index
    %29 = vector.load %arg3[%c2, %c0_10, %c0_11] : memref<3x24x8xbf16, #tpu.memory_space<vmem>>, vector<1x24x8xbf16>
    %30 = vector.shape_cast %29 : vector<1x24x8xbf16> to vector<24x8xbf16>
    %cst_12 = arith.constant dense<0.000000e+00> : vector<256x8xf32>
    %31 = tpu.matmul %28, %30, %cst_12 {dimension_numbers = #tpu.dot_dimension_numbers<[1], [0], [0], [1], [0, 0, 1, 1], [], []>} : vector<256x24xbf16>, vector<24x8xbf16>, vector<256x8xf32> -> vector<256x8xf32>
    %32 = arith.addf %22, %31 : vector<256x8xf32>
    %c0_13 = arith.constant 0 : index
    %c0_14 = arith.constant 0 : index
    %33 = vector.load %arg4[%c0_13, %c0_14] : memref<1x8xf32, #tpu.memory_space<vmem>>, vector<1x8xf32>
    %34 = vector.broadcast %33 : vector<1x8xf32> to vector<256x8xf32>
    %35 = arith.addf %32, %34 : vector<256x8xf32>
    %36 = arith.negf %35 : vector<256x8xf32>
    %37 = math.exp %36 : vector<256x8xf32>
    %cst_15 = arith.constant 1.000000e+00 : f32
    %38 = vector.broadcast %cst_15 : f32 to vector<256x8xf32>
    %39 = arith.addf %38, %37 : vector<256x8xf32>
    %40 = arith.divf %38, %39 : vector<256x8xf32>
    %41 = vector.extract_strided_slice %1 {offsets = [1, 1, 0], sizes = [16, 16, 8], strides = [1, 1, 1]} : vector<18x18x8xbf16> to vector<16x16x8xbf16>
    %42 = vector.shape_cast %41 : vector<16x16x8xbf16> to vector<256x8xbf16>
    %43 = arith.extf %42 : vector<256x8xbf16> to vector<256x8xf32>
    %44 = arith.mulf %43, %40 : vector<256x8xf32>
    %45 = vector.shape_cast %44 : vector<256x8xf32> to vector<16x16x8xf32>
    %c0_16 = arith.constant 0 : index
    %c0_17 = arith.constant 0 : index
    %c0_18 = arith.constant 0 : index
    %c0_19 = arith.constant 0 : index
    %46 = vector.load %arg5[%c0_16, %c0_17, %c0_18, %c0_19] : memref<1x16x16x8xf32, #tpu.memory_space<vmem>>, vector<1x16x16x8xf32>
    %47 = vector.shape_cast %46 : vector<1x16x16x8xf32> to vector<16x16x8xf32>
    %48 = vector.shape_cast %45 : vector<16x16x8xf32> to vector<1x16x16x8xf32>
    tpu.vector_store %arg5[%c0_16, %c0_17, %c0_18, %c0_19], %48 {strides = array<i32>} : memref<1x16x16x8xf32, #tpu.memory_space<vmem>>, vector<1x16x16x8xf32>,
    return
  }
  func.func @transform_0(%arg0: i32, %arg1: i32) -> (i32, i32, i32, i32) {
    %c1_i32 = arith.constant 1 : i32
    %0 = arith.muli %arg0, %c1_i32 : i32
    %1 = arith.addi %0, %arg1 : i32
    %c0_i32 = arith.constant 0 : i32
    %c0_i32_0 = arith.constant 0 : i32
    %c0_i32_1 = arith.constant 0 : i32
    %c0_i32_2 = arith.constant 0 : i32
    return %1, %c0_i32, %c0_i32_0, %c0_i32_1 : i32, i32, i32, i32
  }
  func.func @transform_1(%arg0: i32, %arg1: i32) -> (i32, i32, i32) {
    %c0_i32 = arith.constant 0 : i32
    %c0_i32_0 = arith.constant 0 : i32
    %c0_i32_1 = arith.constant 0 : i32
    %c0_i32_2 = arith.constant 0 : i32
    return %c0_i32, %c0_i32_0, %c0_i32_1 : i32, i32, i32
  }
  func.func @transform_2(%arg0: i32, %arg1: i32) -> (i32, i32) {
    %c0_i32 = arith.constant 0 : i32
    %c0_i32_0 = arith.constant 0 : i32
    %c0_i32_1 = arith.constant 0 : i32
    return %c0_i32, %c0_i32_0 : i32, i32
  }
  func.func @transform_3(%arg0: i32, %arg1: i32) -> (i32, i32, i32, i32) {
    %c0_i32 = arith.constant 0 : i32
    %c0_i32_0 = arith.constant 0 : i32
    %c0_i32_1 = arith.constant 0 : i32
    return %arg0, %arg1, %c0_i32, %c0_i32_0 : i32, i32, i32, i32
  }
}

</mosaic_0001>

<llo_original>
// kernel: wgb_forward.1
$region0: #{wgb_forward.1}
  #allocation0 [shape = 'u32[]', space=smem, size = 0x4, offset = 0x4, fixed_abs, tag = 'smem constant byte address 0x4 - core index']
  #allocation1 [shape = 'u32[144,128]{1,0:T(1,128)}', space=vmem, size = 0x12000, scoped, tag = 'internal scratch']
  %s0 = inlined_call_operand.vmem [shape: bf16[2,18,18,8], index: 0, kind: input, shape index: {}]
  %s1 = inlined_call_operand.vmem [shape: bf16[3,24,8], index: 1, kind: input, shape index: {}]
  %s2 = inlined_call_operand.vmem [shape: f32[1,8], index: 2, kind: input, shape index: {}]
  %s3 = inlined_call_operand.vmem [shape: f32[2,16,16,8], index: 3, kind: output, shape index: {}]
  %s4 = sld [smem:[#allocation0]]
  $region45: #{wgb_forward.1} parent=0
    _
  %s6 = ssub.s32 1, %s4
  %s7 = scalar_select 0, %s6, %s4
  loop: start=0, step=1, limit=4
  $region2: #{wgb_forward.1} parent=0 // loop_pre_header
    _
  $region3: #{wgb_forward.1} parent=0 // loop_header
    %s9 = sphi 0, %s13
    %p10 = scmp.ge.s32.totalorder %s9, 4
    %s16 = sphi 0, %s28
    %s17 = sphi 0, %s24
    %s18 = sphi 0, %s16
    %s19 = sphi 0, %s17
    %s20 = sphi 0, %s18
    %s21 = sphi 0, %s19
    %s33 = sphi 0, %s35
    %s36 = sphi 0, %s33
    %s37 = sphi 0, %s36
    %s53 = sphi 0, %s37
    %s57 = sphi 0, %s57
    %s59 = sphi 0, %s57
    %s60 = sphi 0, %s59
    %s74 = sphi 0, %s60
    %s78 = sphi 0, %s78
    %s80 = sphi 0, %s78
    %s81 = sphi 0, %s80
    %s95 = sphi 0, %s81
    %s103 = sphi 0, %s105
    %s106 = sphi 0, %s103
    %s107 = sphi 0, %s106
    %s123 = sphi 0, %s107
  $region4: #{wgb_forward.1} parent=0 // loop_header_branch
    %12 = sbr.rel (%p10) target = $region8
  $region5: #{wgb_forward.1} parent=0 // loop_body
    %s14 = ssub.s32 %s9, 1
    %s15 = ssub.s32 %s9, 2
    %s22 = sadd.s32 1, %s17
    %p23 = scmp.ge.s32.totalorder %s22, 1
    %s24 = scalar_select %p23, 0, %s22
    %s25 = sadd.s32 1, %s16
    %s26 = scalar_select %p23, %s25, %s16
    %p27 = scmp.ge.s32.totalorder %s26, 2
    %s28 = scalar_select %p27, 0, %s26
    %s29 = sadd.s32 %s16, %s17
    %s30 = sadd.s32 %s28, %s24
    %s31 = ssub.s32 %s29, %s30
    %p32 = scmp.eq.s32.totalorder %s31, 0
    %s34 = sadd.s32 %s33, 1
    %s35 = scalar_select %p32, %s33, %s34
    %p38 = pneg %p32
    %p39 = scmp.eq.s32.totalorder %s9, 1
    %p40 = por %p38, %p39
    %p41 = scmp.ne.s32.totalorder %s33, %s36
    %p42 = scmp.eq.s32.totalorder %s9, 0
    %p43 = por %p41, %p42
    %p44 = scmp.ne.s32.totalorder %s33, %s36
    %p45 = scmp.eq.s32.totalorder %s14, 1
    %p46 = por %p44, %p45
    %p47 = scmp.ne.s32.totalorder %s36, %s37
    %p48 = scmp.eq.s32.totalorder %s14, 0
    %p49 = por %p47, %p48
    %p50 = scmp.ne.s32.totalorder %s36, %s37
    %p51 = scmp.eq.s32.totalorder %s15, 1
    %p52 = por %p50, %p51
    %p54 = scmp.ne.s32.totalorder %s37, %s53
    %p55 = scmp.eq.s32.totalorder %s15, 0
    %p56 = por %p54, %p55
    %s58 = sadd.s32 %s57, 1
    %p61 = scmp.eq.s32.totalorder %s9, 1
    %p62 = scmp.ne.s32.totalorder %s57, %s59
    %p63 = scmp.eq.s32.totalorder %s9, 0
    %p64 = por %p62, %p63
    %p65 = scmp.ne.s32.totalorder %s57, %s59
    %p66 = scmp.eq.s32.totalorder %s14, 1
    %p67 = por %p65, %p66
    %p68 = scmp.ne.s32.totalorder %s59, %s60
    %p69 = scmp.eq.s32.totalorder %s14, 0
    %p70 = por %p68, %p69
    %p71 = scmp.ne.s32.totalorder %s59, %s60
    %p72 = scmp.eq.s32.totalorder %s15, 1
    %p73 = por %p71, %p72
    %p75 = scmp.ne.s32.totalorder %s60, %s74
    %p76 = scmp.eq.s32.totalorder %s15, 0
    %p77 = por %p75, %p76
    %s79 = sadd.s32 %s78, 1
    %p82 = scmp.eq.s32.totalorder %s9, 1
    %p83 = scmp.ne.s32.totalorder %s78, %s80
    %p84 = scmp.eq.s32.totalorder %s9, 0
    %p85 = por %p83, %p84
    %p86 = scmp.ne.s32.totalorder %s78, %s80
    %p87 = scmp.eq.s32.totalorder %s14, 1
    %p88 = por %p86, %p87
    %p89 = scmp.ne.s32.totalorder %s80, %s81
    %p90 = scmp.eq.s32.totalorder %s14, 0
    %p91 = por %p89, %p90
    %p92 = scmp.ne.s32.totalorder %s80, %s81
    %p93 = scmp.eq.s32.totalorder %s15, 1
    %p94 = por %p92, %p93
    %p96 = scmp.ne.s32.totalorder %s81, %s95
    %p97 = scmp.eq.s32.totalorder %s15, 0
    %p98 = por %p96, %p97
    %s99 = ssub.s32 %s16, %s28
    %s100 = ssub.s32 %s17, %s24
    %s101 = sor.u32 %s99, %s100
    %p102 = scmp.eq.s32.totalorder %s101, 0
    %s104 = sadd.s32 %s103, 1
    %s105 = scalar_select %p102, %s103, %s104
    %p108 = pneg %p102
    %p109 = scmp.eq.s32.totalorder %s9, 1
    %p110 = por %p108, %p109
    %p111 = scmp.ne.s32.totalorder %s103, %s106
    %p112 = scmp.eq.s32.totalorder %s9, 0
    %p113 = por %p111, %p112
    %p114 = scmp.ne.s32.totalorder %s103, %s106
    %p115 = scmp.eq.s32.totalorder %s14, 1
    %p116 = por %p114, %p115
    %p117 = scmp.ne.s32.totalorder %s106, %s107
    %p118 = scmp.eq.s32.totalorder %s14, 0
    %p119 = por %p117, %p118
    %p120 = scmp.ne.s32.totalorder %s106, %s107
    %p121 = scmp.eq.s32.totalorder %s15, 1
    %p122 = por %p120, %p121
    %p124 = scmp.ne.s32.totalorder %s107, %s123
    %p125 = scmp.eq.s32.totalorder %s15, 0
    %p126 = por %p124, %p125
    %p127 = scmp.le.s32.totalorder 1, %s9
    %p128 = scmp.lt.s32.totalorder %s9, 3
    %p129 = pnand %p127, %p128
    %p130 = pneg %p129
    // Predicated region
    $region9: #{wgb_forward.1} parent=5 // pred_check
      _
    $region10: #{wgb_forward.1} parent=5 // pred_check_branch
      %132 = sbr.rel (%p129) target = $region12
    $region11: #{wgb_forward.1} parent=5 // pred_region
      %s133 = ssub.s32 %s9, 1
      // Predicated region
      $region13: #{wgb_forward.1} parent=11 // pred_check
        %p134 = pneg %p70
      $region14: #{wgb_forward.1} parent=11 // pred_check_branch
        %136 = sbr.rel (%p134) target = $region16
      $region15: #{wgb_forward.1} parent=11 // pred_region
        _
      $region16: #{wgb_forward.1} parent=11 // pred_fallthru
        _
      // Predicated region
      $region17: #{wgb_forward.1} parent=11 // pred_check
        %p137 = pneg %p91
      $region18: #{wgb_forward.1} parent=11 // pred_check_branch
        %139 = sbr.rel (%p137) target = $region20
      $region19: #{wgb_forward.1} parent=11 // pred_region
        _
      $region20: #{wgb_forward.1} parent=11 // pred_fallthru
        _
    $region12: #{wgb_forward.1} parent=5 // pred_fallthru
      _
    %p140 = scmp.lt.s32.totalorder %s9, 2
    // Predicated region
    $region21: #{wgb_forward.1} parent=5 // pred_check
      %p141 = pneg %p140
    $region22: #{wgb_forward.1} parent=5 // pred_check_branch
      %143 = sbr.rel (%p141) target = $region24
    $region23: #{wgb_forward.1} parent=5 // pred_region
      // Predicated region
      $region25: #{wgb_forward.1} parent=23 // pred_check
        %p144 = pneg %p43
      $region26: #{wgb_forward.1} parent=23 // pred_check_branch
        %146 = sbr.rel (%p144) target = $region28
      $region27: #{wgb_forward.1} parent=23 // pred_region
        %s147 = sadd.s32 %s16, %s17
        %p148 = scmp.lt.s32.totalorder %s147, 1
        %s149 = scalar_select %p148, %s147, 1
        %s150 = smul.addr %s149, 54
        %s151 = smul.addr %s150, 4
        %s152 = scalar_lea.vmem %s0, %s151
        %s153 = sadd.s32 %s16, %s17
      $region28: #{wgb_forward.1} parent=23 // pred_fallthru
        _
    $region24: #{wgb_forward.1} parent=5 // pred_fallthru
      _
    %p154 = scmp.le.s32.totalorder 1, %s9
    %p155 = scmp.lt.s32.totalorder %s9, 3
    %p156 = pnand %p154, %p155
    %p157 = pneg %p156
    // Predicated region
    $region29: #{wgb_forward.1} parent=5 // pred_check
      _
    $region30: #{wgb_forward.1} parent=5 // pred_check_branch
      %159 = sbr.rel (%p156) target = $region32
    $region31: #{wgb_forward.1} parent=5 // pred_region
      %s160 = ssub.s32 %s9, 1
      %s161 = sadd.s32 %s18, %s19
      %p162 = scmp.lt.s32.totalorder %s161, 1
      %s163 = scalar_select %p162, %s161, 1
      %s164 = smul.addr %s163, 54
      %s165 = smul.addr %s164, 4
      %s166 = scalar_lea.vmem %s0, %s165
      %p167 = pneg %p49
      %p168 = pneg %p46
      %p169 = pneg %p70
      %p170 = pneg %p67
      %p171 = pneg %p91
      %p172 = pneg %p88
      %p173 = pneg %p119
      %p174 = pneg %p116
      %s175 = smul.u32 16, %s19
      %p176 = scmp.lt.s32.totalorder %s18, 1
      %s177 = scalar_select %p176, %s18, 1
      %p178 = scmp.lt.s32.totalorder %s175, 15
      %s179 = scalar_select %p178, %s175, 15
      %s180 = smul.addr %s179, 2
      %s181 = smul.addr %s177, 32
      %s182 = sadd.s32 %s180, %s181
      %s183 = smul.addr %s182, 8
      %s184 = scalar_lea.vmem %s3, %s183
      %s185 = sadd.s32 %s18, %s19
      %p186 = scmp.lt.s32.totalorder %s185, 1
      %s187 = scalar_select %p186, %s185, 1
      %s188 = smul.addr %s187, 54
      %s189 = smul.addr %s188, 4
      %s190 = scalar_lea.vmem %s0, %s189
      %s191 = sadd.s32 %s18, %s19
      %s192 = smul.u32 16, %s19
      %p193 = scmp.lt.s32.totalorder %s18, 1
      %s194 = scalar_select %p193, %s18, 1
      %p195 = scmp.lt.s32.totalorder %s192, 15
      %s196 = scalar_select %p195, %s192, 15
      %s197 = smul.addr %s196, 2
      %s198 = smul.addr %s194, 32
      %s199 = sadd.s32 %s197, %s198
      %s200 = smul.addr %s199, 8
      %s201 = scalar_lea.vmem %s3, %s200
      %s202 = smul.u32 16, %s19
      %v204 = vld [vmem:[%s190] sm:$0xf]
      %v205 = vld [vmem:[%s190 + $0x4] sm:$0xf]
      %v206 = vld [vmem:[%s190 + $0x8] sm:$0x1]
      %v207 = vld [vmem:[%s190 + $0xc] sm:$0xf]
      %v208 = vld [vmem:[%s190 + $0x10] sm:$0xf]
      %v209 = vld [vmem:[%s190 + $0x14] sm:$0x1]
      %v210 = vld [vmem:[%s190 + $0x18] sm:$0xf]
      %v211 = vld [vmem:[%s190 + $0x1c] sm:$0xf]
      %v212 = vld [vmem:[%s190 + $0x20] sm:$0x1]
      %v213 = vld [vmem:[%s190 + $0x24] sm:$0xf]
      %v214 = vld [vmem:[%s190 + $0x28] sm:$0xf]
      %v215 = vld [vmem:[%s190 + $0x2c] sm:$0x1]
      %v216 = vld [vmem:[%s190 + $0x30] sm:$0xf]
      %v217 = vld [vmem:[%s190 + $0x34] sm:$0xf]
      %v218 = vld [vmem:[%s190 + $0x38] sm:$0x1]
      %v219 = vld [vmem:[%s190 + $0x3c] sm:$0xf]
      %v220 = vld [vmem:[%s190 + $0x40] sm:$0xf]
      %v221 = vld [vmem:[%s190 + $0x44] sm:$0x1]
      %v222 = vld [vmem:[%s190 + $0x48] sm:$0xf]
      %v223 = vld [vmem:[%s190 + $0x4c] sm:$0xf]
      %v224 = vld [vmem:[%s190 + $0x50] sm:$0x1]
      %v225 = vld [vmem:[%s190 + $0x54] sm:$0xf]
      %v226 = vld [vmem:[%s190 + $0x58] sm:$0xf]
      %v227 = vld [vmem:[%s190 + $0x5c] sm:$0x1]
      %v228 = vld [vmem:[%s190 + $0x60] sm:$0xf]
      %v229 = vld [vmem:[%s190 + $0x64] sm:$0xf]
      %v230 = vld [vmem:[%s190 + $0x68] sm:$0x1]
      %v231 = vld [vmem:[%s190 + $0x6c] sm:$0xf]
      %v232 = vld [vmem:[%s190 + $0x70] sm:$0xf]
      %v233 = vld [vmem:[%s190 + $0x74] sm:$0x1]
      %v234 = vld [vmem:[%s190 + $0x78] sm:$0xf]
      %v235 = vld [vmem:[%s190 + $0x7c] sm:$0xf]
      %v236 = vld [vmem:[%s190 + $0x80] sm:$0x1]
      %v237 = vld [vmem:[%s190 + $0x84] sm:$0xf]
      %v238 = vld [vmem:[%s190 + $0x88] sm:$0xf]
      %v239 = vld [vmem:[%s190 + $0x8c] sm:$0x1]
      %v240 = vld [vmem:[%s190 + $0x90] sm:$0xf]
      %v241 = vld [vmem:[%s190 + $0x94] sm:$0xf]
      %v242 = vld [vmem:[%s190 + $0x98] sm:$0x1]
      %v243 = vld [vmem:[%s190 + $0x9c] sm:$0xf]
      %v244 = vld [vmem:[%s190 + $0xa0] sm:$0xf]
      %v245 = vld [vmem:[%s190 + $0xa4] sm:$0x1]
      %v246 = vld [vmem:[%s190 + $0xa8] sm:$0xf]
      %v247 = vld [vmem:[%s190 + $0xac] sm:$0xf]
      %v248 = vld [vmem:[%s190 + $0xb0] sm:$0x1]
      %v249 = vld [vmem:[%s190 + $0xb4] sm:$0xf]
      %v250 = vld [vmem:[%s190 + $0xb8] sm:$0xf]
      %v251 = vld [vmem:[%s190 + $0xbc] sm:$0x1]
      %v252 = vld [vmem:[%s190 + $0xc0] sm:$0xf]
      %v253 = vld [vmem:[%s190 + $0xc4] sm:$0xf]
      %v254 = vld [vmem:[%s190 + $0xc8] sm:$0x1]
      %v255 = vld [vmem:[%s190 + $0xcc] sm:$0xf]
      %v256 = vld [vmem:[%s190 + $0xd0] sm:$0xf]
      %v257 = vld [vmem:[%s190 + $0xd4] sm:$0x1]
      %v290 = vunpack.c.l.b16 %v204
      %v291 = vunpack.c.l.b16 %v205
      %v292 = vunpack.c.l.b16 %v207
      %v293 = vunpack.c.l.b16 %v208
      %v294 = vunpack.c.l.b16 %v210
      %v295 = vunpack.c.l.b16 %v211
      %v296 = vunpack.c.l.b16 %v213
      %v297 = vunpack.c.l.b16 %v214
      %v298 = vunpack.c.l.b16 %v216
      %v299 = vunpack.c.l.b16 %v217
      %v300 = vunpack.c.l.b16 %v219
      %v301 = vunpack.c.l.b16 %v220
      %v302 = vunpack.c.l.b16 %v222
      %v303 = vunpack.c.l.b16 %v223
      %v304 = vunpack.c.l.b16 %v225
      %v305 = vunpack.c.l.b16 %v226
      %v306 = vunpack.c.l.b16 %v228
      %v307 = vunpack.c.l.b16 %v229
      %v308 = vunpack.c.l.b16 %v231
      %v309 = vunpack.c.l.b16 %v232
      %v310 = vunpack.c.l.b16 %v234
      %v311 = vunpack.c.l.b16 %v235
      %v312 = vunpack.c.l.b16 %v237
      %v313 = vunpack.c.l.b16 %v238
      %v314 = vunpack.c.l.b16 %v240
      %v315 = vunpack.c.l.b16 %v241
      %v316 = vunpack.c.l.b16 %v243
      %v317 = vunpack.c.l.b16 %v244
      %v318 = vunpack.c.l.b16 %v246
      %v319 = vunpack.c.l.b16 %v247
      %v320 = vunpack.c.l.b16 %v249
      %v321 = vunpack.c.l.b16 %v250
      %v322 = vpack.c.b16 %v291, %v290
      %v323 = vpack.c.b16 %v293, %v292
      %v324 = vpack.c.b16 %v295, %v294
      %v325 = vpack.c.b16 %v297, %v296
      %v326 = vpack.c.b16 %v299, %v298
      %v327 = vpack.c.b16 %v301, %v300
      %v328 = vpack.c.b16 %v303, %v302
      %v329 = vpack.c.b16 %v305, %v304
      %v330 = vpack.c.b16 %v307, %v306
      %v331 = vpack.c.b16 %v309, %v308
      %v332 = vpack.c.b16 %v311, %v310
      %v333 = vpack.c.b16 %v313, %v312
      %v334 = vpack.c.b16 %v315, %v314
      %v335 = vpack.c.b16 %v317, %v316
      %v336 = vpack.c.b16 %v319, %v318
      %v337 = vpack.c.b16 %v321, %v320
      %v354 = vunpack.c.l.b16 %v206
      %v355 = vunpack.c.l.b16 %v209
      %v356 = vunpack.c.l.b16 %v212
      %v357 = vunpack.c.l.b16 %v215
      %v358 = vunpack.c.l.b16 %v218
      %v359 = vunpack.c.l.b16 %v221
      %v360 = vunpack.c.l.b16 %v224
      %v361 = vunpack.c.l.b16 %v227
      %v362 = vunpack.c.l.b16 %v230
      %v363 = vunpack.c.l.b16 %v233
      %v364 = vunpack.c.l.b16 %v236
      %v365 = vunpack.c.l.b16 %v239
      %v366 = vunpack.c.l.b16 %v242
      %v367 = vunpack.c.l.b16 %v245
      %v368 = vunpack.c.l.b16 %v248
      %v369 = vunpack.c.l.b16 %v251
      %v370 = vpack.c.b16 %v354, %v354
      %v371 = vpack.c.b16 %v355, %v355
      %v372 = vpack.c.b16 %v356, %v356
      %v373 = vpack.c.b16 %v357, %v357
      %v374 = vpack.c.b16 %v358, %v358
      %v375 = vpack.c.b16 %v359, %v359
      %v376 = vpack.c.b16 %v360, %v360
      %v377 = vpack.c.b16 %v361, %v361
      %v378 = vpack.c.b16 %v362, %v362
      %v379 = vpack.c.b16 %v363, %v363
      %v380 = vpack.c.b16 %v364, %v364
      %v381 = vpack.c.b16 %v365, %v365
      %v382 = vpack.c.b16 %v366, %v366
      %v383 = vpack.c.b16 %v367, %v367
      %v384 = vpack.c.b16 %v368, %v368
      %v385 = vpack.c.b16 %v369, %v369
      %vm386 = vsmask.f32 7424
      %v388 = vshrl.u32 %v322, 16
      %v390 = vshll.u32 %v322, 16
      %v392 = vrot.slane %v390, 1
      %v393 = vor.u32 %v388, %v392
      %v395 = vshll.u32 %v370, 16
      %v397 = vrot.slane %v395, 1
      %v398 = vsel %vm386, %v393, %v397
      %v400 = vshrl.u32 %v323, 16
      %v402 = vshll.u32 %v323, 16
      %v404 = vrot.slane %v402, 1
      %v405 = vor.u32 %v400, %v404
      %v407 = vshll.u32 %v371, 16
      %v409 = vrot.slane %v407, 1
      %v410 = vsel %vm386, %v405, %v409
      %v412 = vshrl.u32 %v324, 16
      %v414 = vshll.u32 %v324, 16
      %v416 = vrot.slane %v414, 1
      %v417 = vor.u32 %v412, %v416
      %v419 = vshll.u32 %v372, 16
      %v421 = vrot.slane %v419, 1
      %v422 = vsel %vm386, %v417, %v421
      %v424 = vshrl.u32 %v325, 16
      %v426 = vshll.u32 %v325, 16
      %v428 = vrot.slane %v426, 1
      %v429 = vor.u32 %v424, %v428
      %v431 = vshll.u32 %v373, 16
      %v433 = vrot.slane %v431, 1
      %v434 = vsel %vm386, %v429, %v433
      %v436 = vshrl.u32 %v326, 16
      %v438 = vshll.u32 %v326, 16
      %v440 = vrot.slane %v438, 1
      %v441 = vor.u32 %v436, %v440
      %v443 = vshll.u32 %v374, 16
      %v445 = vrot.slane %v443, 1
      %v446 = vsel %vm386, %v441, %v445
      %v448 = vshrl.u32 %v327, 16
      %v450 = vshll.u32 %v327, 16
      %v452 = vrot.slane %v450, 1
      %v453 = vor.u32 %v448, %v452
      %v455 = vshll.u32 %v375, 16
      %v457 = vrot.slane %v455, 1
      %v458 = vsel %vm386, %v453, %v457
      %v460 = vshrl.u32 %v328, 16
      %v462 = vshll.u32 %v328, 16
      %v464 = vrot.slane %v462, 1
      %v465 = vor.u32 %v460, %v464
      %v467 = vshll.u32 %v376, 16
      %v469 = vrot.slane %v467, 1
      %v470 = vsel %vm386, %v465, %v469
      %v472 = vshrl.u32 %v329, 16
      %v474 = vshll.u32 %v329, 16
      %v476 = vrot.slane %v474, 1
      %v477 = vor.u32 %v472, %v476
      %v479 = vshll.u32 %v377, 16
      %v481 = vrot.slane %v479, 1
      %v482 = vsel %vm386, %v477, %v481
      %v484 = vshrl.u32 %v330, 16
      %v486 = vshll.u32 %v330, 16
      %v488 = vrot.slane %v486, 1
      %v489 = vor.u32 %v484, %v488
      %v491 = vshll.u32 %v378, 16
      %v493 = vrot.slane %v491, 1
      %v494 = vsel %vm386, %v489, %v493
      %v496 = vshrl.u32 %v331, 16
      %v498 = vshll.u32 %v331, 16
      %v500 = vrot.slane %v498, 1
      %v501 = vor.u32 %v496, %v500
      %v503 = vshll.u32 %v379, 16
      %v505 = vrot.slane %v503, 1
      %v506 = vsel %vm386, %v501, %v505
      %v508 = vshrl.u32 %v332, 16
      %v510 = vshll.u32 %v332, 16
      %v512 = vrot.slane %v510, 1
      %v513 = vor.u32 %v508, %v512
      %v515 = vshll.u32 %v380, 16
      %v517 = vrot.slane %v515, 1
      %v518 = vsel %vm386, %v513, %v517
      %v520 = vshrl.u32 %v333, 16
      %v522 = vshll.u32 %v333, 16
      %v524 = vrot.slane %v522, 1
      %v525 = vor.u32 %v520, %v524
      %v527 = vshll.u32 %v381, 16
      %v529 = vrot.slane %v527, 1
      %v530 = vsel %vm386, %v525, %v529
      %v532 = vshrl.u32 %v334, 16
      %v534 = vshll.u32 %v334, 16
      %v536 = vrot.slane %v534, 1
      %v537 = vor.u32 %v532, %v536
      %v539 = vshll.u32 %v382, 16
      %v541 = vrot.slane %v539, 1
      %v542 = vsel %vm386, %v537, %v541
      %v544 = vshrl.u32 %v335, 16
      %v546 = vshll.u32 %v335, 16
      %v548 = vrot.slane %v546, 1
      %v549 = vor.u32 %v544, %v548
      %v551 = vshll.u32 %v383, 16
      %v553 = vrot.slane %v551, 1
      %v554 = vsel %vm386, %v549, %v553
      %v556 = vshrl.u32 %v336, 16
      %v558 = vshll.u32 %v336, 16
      %v560 = vrot.slane %v558, 1
      %v561 = vor.u32 %v556, %v560
      %v563 = vshll.u32 %v384, 16
      %v565 = vrot.slane %v563, 1
      %v566 = vsel %vm386, %v561, %v565
      %v568 = vshrl.u32 %v337, 16
      %v570 = vshll.u32 %v337, 16
      %v572 = vrot.slane %v570, 1
      %v573 = vor.u32 %v568, %v572
      %v575 = vshll.u32 %v385, 16
      %v577 = vrot.slane %v575, 1
      %v578 = vsel %vm386, %v573, %v577
      %579 = vrot.lane.b32.xlu0 %v398, 8
      %v580 = vpop.permute.xlu0 %579
      %581 = vrot.lane.b32.xlu0 %v410, 8
      %v582 = vpop.permute.xlu0 %581
      %583 = vrot.lane.b32.xlu0 %v422, 8
      %v584 = vpop.permute.xlu0 %583
      %585 = vrot.lane.b32.xlu0 %v434, 8
      %v586 = vpop.permute.xlu0 %585
      %587 = vrot.lane.b32.xlu0 %v446, 8
      %v588 = vpop.permute.xlu0 %587
      %589 = vrot.lane.b32.xlu0 %v458, 8
      %v590 = vpop.permute.xlu0 %589
      %591 = vrot.lane.b32.xlu0 %v470, 8
      %v592 = vpop.permute.xlu0 %591
      %593 = vrot.lane.b32.xlu0 %v482, 8
      %v594 = vpop.permute.xlu0 %593
      %595 = vrot.lane.b32.xlu0 %v494, 8
      %v596 = vpop.permute.xlu0 %595
      %597 = vrot.lane.b32.xlu0 %v506, 8
      %v598 = vpop.permute.xlu0 %597
      %599 = vrot.lane.b32.xlu0 %v518, 8
      %v600 = vpop.permute.xlu0 %599
      %601 = vrot.lane.b32.xlu0 %v530, 8
      %v602 = vpop.permute.xlu0 %601
      %603 = vrot.lane.b32.xlu0 %v542, 8
      %v604 = vpop.permute.xlu0 %603
      %605 = vrot.lane.b32.xlu0 %v554, 8
      %v606 = vpop.permute.xlu0 %605
      %607 = vrot.lane.b32.xlu0 %v566, 8
      %v608 = vpop.permute.xlu0 %607
      %609 = vrot.lane.b32.xlu0 %v578, 8
      %v610 = vpop.permute.xlu0 %609
      %vm611 = vcmask 1046528
      %v612 = vrot.slane %v322, 1
      %v613 = vrot.slane %v370, 1
      %v614 = vsel %vm611, %v612, %v613
      %v615 = vrot.slane %v323, 1
      %v616 = vrot.slane %v371, 1
      %v617 = vsel %vm611, %v615, %v616
      %v618 = vrot.slane %v324, 1
      %v619 = vrot.slane %v372, 1
      %v620 = vsel %vm611, %v618, %v619
      %v621 = vrot.slane %v325, 1
      %v622 = vrot.slane %v373, 1
      %v623 = vsel %vm611, %v621, %v622
      %v624 = vrot.slane %v326, 1
      %v625 = vrot.slane %v374, 1
      %v626 = vsel %vm611, %v624, %v625
      %v627 = vrot.slane %v327, 1
      %v628 = vrot.slane %v375, 1
      %v629 = vsel %vm611, %v627, %v628
      %v630 = vrot.slane %v328, 1
      %v631 = vrot.slane %v376, 1
      %v632 = vsel %vm611, %v630, %v631
      %v633 = vrot.slane %v329, 1
      %v634 = vrot.slane %v377, 1
      %v635 = vsel %vm611, %v633, %v634
      %v636 = vrot.slane %v330, 1
      %v637 = vrot.slane %v378, 1
      %v638 = vsel %vm611, %v636, %v637
      %v639 = vrot.slane %v331, 1
      %v640 = vrot.slane %v379, 1
      %v641 = vsel %vm611, %v639, %v640
      %v642 = vrot.slane %v332, 1
      %v643 = vrot.slane %v380, 1
      %v644 = vsel %vm611, %v642, %v643
      %v645 = vrot.slane %v333, 1
      %v646 = vrot.slane %v381, 1
      %v647 = vsel %vm611, %v645, %v646
      %v648 = vrot.slane %v334, 1
      %v649 = vrot.slane %v382, 1
      %v650 = vsel %vm611, %v648, %v649
      %v651 = vrot.slane %v335, 1
      %v652 = vrot.slane %v383, 1
      %v653 = vsel %vm611, %v651, %v652
      %v654 = vrot.slane %v336, 1
      %v655 = vrot.slane %v384, 1
      %v656 = vsel %vm611, %v654, %v655
      %v657 = vrot.slane %v337, 1
      %v658 = vrot.slane %v385, 1
      %v659 = vsel %vm611, %v657, %v658
      %660 = vrot.lane.b32.xlu0 %v614, 16
      %v661 = vpop.permute.xlu0 %660
      %662 = vrot.lane.b32.xlu0 %v617, 16
      %v663 = vpop.permute.xlu0 %662
      %664 = vrot.lane.b32.xlu0 %v620, 16
      %v665 = vpop.permute.xlu0 %664
      %666 = vrot.lane.b32.xlu0 %v623, 16
      %v667 = vpop.permute.xlu0 %666
      %668 = vrot.lane.b32.xlu0 %v626, 16
      %v669 = vpop.permute.xlu0 %668
      %670 = vrot.lane.b32.xlu0 %v629, 16
      %v671 = vpop.permute.xlu0 %670
      %672 = vrot.lane.b32.xlu0 %v632, 16
      %v673 = vpop.permute.xlu0 %672
      %674 = vrot.lane.b32.xlu0 %v635, 16
      %v675 = vpop.permute.xlu0 %674
      %676 = vrot.lane.b32.xlu0 %v638, 16
      %v677 = vpop.permute.xlu0 %676
      %678 = vrot.lane.b32.xlu0 %v641, 16
      %v679 = vpop.permute.xlu0 %678
      %680 = vrot.lane.b32.xlu0 %v644, 16
      %v681 = vpop.permute.xlu0 %680
      %682 = vrot.lane.b32.xlu0 %v647, 16
      %v683 = vpop.permute.xlu0 %682
      %684 = vrot.lane.b32.xlu0 %v650, 16
      %v685 = vpop.permute.xlu0 %684
      %686 = vrot.lane.b32.xlu0 %v653, 16
      %v687 = vpop.permute.xlu0 %686
      %688 = vrot.lane.b32.xlu0 %v656, 16
      %v689 = vpop.permute.xlu0 %688
      %690 = vrot.lane.b32.xlu0 %v659, 16
      %v691 = vpop.permute.xlu0 %690
      %vm692 = vcmask 64512
      %v694 = vsel %vm692, %v322, %v580
      %v696 = vsel %vm692, %v323, %v582
      %v698 = vsel %vm692, %v324, %v584
      %v700 = vsel %vm692, %v325, %v586
      %v702 = vsel %vm692, %v326, %v588
      %v704 = vsel %vm692, %v327, %v590
      %v706 = vsel %vm692, %v328, %v592
      %v708 = vsel %vm692, %v329, %v594
      %v710 = vsel %vm692, %v330, %v596
      %v712 = vsel %vm692, %v331, %v598
      %v714 = vsel %vm692, %v332, %v600
      %v716 = vsel %vm692, %v333, %v602
      %v718 = vsel %vm692, %v334, %v604
      %v720 = vsel %vm692, %v335, %v606
      %v722 = vsel %vm692, %v336, %v608
      %v724 = vsel %vm692, %v337, %v610
      %vm725 = vcmask 130048
      %v727 = vsel %vm725, %v694, %v661
      %v729 = vsel %vm725, %v696, %v663
      %v731 = vsel %vm725, %v698, %v665
      %v733 = vsel %vm725, %v700, %v667
      %v735 = vsel %vm725, %v702, %v669
      %v737 = vsel %vm725, %v704, %v671
      %v739 = vsel %vm725, %v706, %v673
      %v741 = vsel %vm725, %v708, %v675
      %v743 = vsel %vm725, %v710, %v677
      %v745 = vsel %vm725, %v712, %v679
      %v747 = vsel %vm725, %v714, %v681
      %v749 = vsel %vm725, %v716, %v683
      %v751 = vsel %vm725, %v718, %v685
      %v753 = vsel %vm725, %v720, %v687
      %v755 = vsel %vm725, %v722, %v689
      %v757 = vsel %vm725, %v724, %v691
      %v758 = vld [vmem:[%s1] sm:$0xf]
      %v759 = vld [vmem:[%s1 + $0x4] sm:$0xf]
      %v760 = vld [vmem:[%s1 + $0x8] sm:$0xf]
      %v763 = vunpack.c.l.b16 %v252
      %v764 = vunpack.c.l.b16 %v253
      %v765 = vpack.c.b16 %v764, %v763
      %v767 = vunpack.c.l.b16 %v254
      %v768 = vpack.c.b16 %v767, %v767
      %v770 = vshrl.u32 %v765, 16
      %v772 = vshll.u32 %v765, 16
      %v774 = vrot.slane %v772, 1
      %v775 = vor.u32 %v770, %v774
      %v777 = vshll.u32 %v768, 16
      %v779 = vrot.slane %v777, 1
      %v780 = vsel %vm386, %v775, %v779
      %781 = vrot.lane.b32.xlu0 %v780, 8
      %v782 = vpop.permute.xlu0 %781
      %v783 = vrot.slane %v765, 1
      %v784 = vrot.slane %v768, 1
      %v785 = vsel %vm611, %v783, %v784
      %786 = vrot.lane.b32.xlu0 %v785, 16
      %v787 = vpop.permute.xlu0 %786
      %v789 = vsel %vm692, %v765, %v782
      %v791 = vsel %vm725, %v789, %v787
      %s792 = scalar_lea.vmem %s1, 12
      %v793 = vld [vmem:[%s792] sm:$0xf]
      %v794 = vld [vmem:[%s792 + $0x4] sm:$0xf]
      %v795 = vld [vmem:[%s792 + $0x8] sm:$0xf]
      %v799 = vunpack.c.l.b16 %v793
      %v800 = vunpack.c.l.b16 %v794
      %v801 = vunpack.c.l.b16 %v795
      %v802 = vpack.c.b16 %v800, %v799
      %v803 = vpack.c.b16 %v801, %v801
      %vm805 = vcmask 195584
      %v806 = vsel %vm805, %v729, 0
      %v808 = vsel %vm805, %v731, 0
      %v810 = vsel %vm805, %v733, 0
      %v812 = vsel %vm805, %v735, 0
      %v814 = vsel %vm805, %v737, 0
      %v816 = vsel %vm805, %v739, 0
      %v818 = vsel %vm805, %v741, 0
      %v820 = vsel %vm805, %v743, 0
      %v822 = vsel %vm805, %v745, 0
      %v824 = vsel %vm805, %v747, 0
      %v826 = vsel %vm805, %v749, 0
      %v828 = vsel %vm805, %v751, 0
      %v830 = vsel %vm805, %v753, 0
      %v832 = vsel %vm805, %v755, 0
      %v834 = vsel %vm805, %v757, 0
      %v836 = vsel %vm805, %v791, 0
      %vm838 = vcmask 1043456
      %v840 = vsel %vm838, %v803, 0
      %842 = vmatprep.subr.bf16.mxu0 0
      %843 = vmatpush1.bf16.msra.mxu0 %v802
      %844 = vmatprep.subr.bf16.mxu0 0
      %845 = vmatpush1.bf16.msra.mxu0 %v840
      %846 = vmatprep.subr.bf16.mxu0 0
      %847 = vmatpush1.bf16.msra.mxu0 0
      %848 = vmatprep.subr.bf16.mxu0 0
      %849 = vmatpush1.bf16.msra.mxu0 0
      %850 = vmatprep.subr.bf16.mxu0 0
      %851 = vmatpush1.bf16.msra.mxu0 0
      %852 = vmatprep.subr.bf16.mxu0 0
      %853 = vmatpush1.bf16.msra.mxu0 0
      %854 = vmatprep.subr.bf16.mxu0 0
      %855 = vmatpush1.bf16.msra.mxu0 0
      %856 = vmatprep.subr.bf16.mxu0 0
      %857 = vmatpush1.bf16.msra.mxu0 0
      %858 = vmatprep.subr.bf16.mxu0 0
      %859 = vmatpush1.bf16.msra.mxu0 0
      %860 = vmatprep.subr.bf16.mxu0 0
      %861 = vmatpush1.bf16.msra.mxu0 0
      %862 = vmatprep.subr.bf16.mxu0 0
      %863 = vmatpush1.bf16.msra.mxu0 0
      %864 = vmatprep.subr.bf16.mxu0 0
      %865 = vmatpush1.bf16.msra.mxu0 0
      %866 = vmatprep.subr.bf16.mxu0 0
      %867 = vmatpush1.bf16.msra.mxu0 0
      %868 = vmatprep.subr.bf16.mxu0 0
      %869 = vmatpush1.bf16.msra.mxu0 0
      %870 = vmatprep.subr.bf16.mxu0 0
      %871 = vmatpush1.bf16.msra.mxu0 0
      %872 = vmatprep.subr.bf16.mxu0 0
      %873 = vmatpush1.bf16.msra.mxu0 0
      %874 = vmatprep.mubr.bf16.mxu0 0
      %875 = vmatmul.mubr.bf16.gmra.mrb[0].mxu0 %v806
      %v876 = vpop.f32.mrb[0].mxu0
      %v877 = vadd.f32 0.0, %v876
      %v878 = vpop.f32.mrb[0].mxu0
      %v879 = vpop.f32.mrb[0].mxu0
      %v880 = vadd.f32 0.0, %v879
      %v881 = vpop.f32.mrb[0].mxu0
      %882 = vmatprep.mubr.bf16.mxu0 0
      %883 = vmatmul.mubr.bf16.gmra.mrb[0].mxu0 %v808
      %v884 = vpop.f32.mrb[0].mxu0
      %v885 = vadd.f32 0.0, %v884
      %v886 = vpop.f32.mrb[0].mxu0
      %v887 = vpop.f32.mrb[0].mxu0
      %v888 = vadd.f32 0.0, %v887
      %v889 = vpop.f32.mrb[0].mxu0
      %890 = vmatprep.mubr.bf16.mxu0 0
      %891 = vmatmul.mubr.bf16.gmra.mrb[0].mxu0 %v810
      %v892 = vpop.f32.mrb[0].mxu0
      %v893 = vadd.f32 0.0, %v892
      %v894 = vpop.f32.mrb[0].mxu0
      %v895 = vpop.f32.mrb[0].mxu0
      %v896 = vadd.f32 0.0, %v895
      %v897 = vpop.f32.mrb[0].mxu0
      %898 = vmatprep.mubr.bf16.mxu0 0
      %899 = vmatmul.mubr.bf16.gmra.mrb[0].mxu0 %v812
      %v900 = vpop.f32.mrb[0].mxu0
      %v901 = vadd.f32 0.0, %v900
      %v902 = vpop.f32.mrb[0].mxu0
      %v903 = vpop.f32.mrb[0].mxu0
      %v904 = vadd.f32 0.0, %v903
      %v905 = vpop.f32.mrb[0].mxu0
      %906 = vmatprep.mubr.bf16.mxu0 0
      %907 = vmatmul.mubr.bf16.gmra.mrb[0].mxu0 %v814
      %v908 = vpop.f32.mrb[0].mxu0
      %v909 = vadd.f32 0.0, %v908
      %v910 = vpop.f32.mrb[0].mxu0
      %v911 = vpop.f32.mrb[0].mxu0
      %v912 = vadd.f32 0.0, %v911
      %v913 = vpop.f32.mrb[0].mxu0
      %914 = vmatprep.mubr.bf16.mxu0 0
      %915 = vmatmul.mubr.bf16.gmra.mrb[0].mxu0 %v816
      %v916 = vpop.f32.mrb[0].mxu0
      %v917 = vadd.f32 0.0, %v916
      %v918 = vpop.f32.mrb[0].mxu0
      %v919 = vpop.f32.mrb[0].mxu0
      %v920 = vadd.f32 0.0, %v919
      %v921 = vpop.f32.mrb[0].mxu0
      %922 = vmatprep.mubr.bf16.mxu0 0
      %923 = vmatmul.mubr.bf16.gmra.mrb[0].mxu0 %v818
      %v924 = vpop.f32.mrb[0].mxu0
      %v925 = vadd.f32 0.0, %v924
      %v926 = vpop.f32.mrb[0].mxu0
      %v927 = vpop.f32.mrb[0].mxu0
      %v928 = vadd.f32 0.0, %v927
      %v929 = vpop.f32.mrb[0].mxu0
      %930 = vmatprep.mubr.bf16.mxu0 0
      %931 = vmatmul.mubr.bf16.gmra.mrb[0].mxu0 %v820
      %v932 = vpop.f32.mrb[0].mxu0
      %v933 = vadd.f32 0.0, %v932
      %v934 = vpop.f32.mrb[0].mxu0
      %v935 = vpop.f32.mrb[0].mxu0
      %v936 = vadd.f32 0.0, %v935
      %v937 = vpop.f32.mrb[0].mxu0
      %938 = vmatprep.mubr.bf16.mxu0 0
      %939 = vmatmul.mubr.bf16.gmra.mrb[0].mxu0 %v822
      %v940 = vpop.f32.mrb[0].mxu0
      %v941 = vadd.f32 0.0, %v940
      %v942 = vpop.f32.mrb[0].mxu0
      %v943 = vpop.f32.mrb[0].mxu0
      %v944 = vadd.f32 0.0, %v943
      %v945 = vpop.f32.mrb[0].mxu0
      %946 = vmatprep.mubr.bf16.mxu0 0
      %947 = vmatmul.mubr.bf16.gmra.mrb[0].mxu0 %v824
      %v948 = vpop.f32.mrb[0].mxu0
      %v949 = vadd.f32 0.0, %v948
      %v950 = vpop.f32.mrb[0].mxu0
      %v951 = vpop.f32.mrb[0].mxu0
      %v952 = vadd.f32 0.0, %v951
      %v953 = vpop.f32.mrb[0].mxu0
      %954 = vmatprep.mubr.bf16.mxu0 0
      %955 = vmatmul.mubr.bf16.gmra.mrb[0].mxu0 %v826
      %v956 = vpop.f32.mrb[0].mxu0
      %v957 = vadd.f32 0.0, %v956
      %v958 = vpop.f32.mrb[0].mxu0
      %v959 = vpop.f32.mrb[0].mxu0
      %v960 = vadd.f32 0.0, %v959
      %v961 = vpop.f32.mrb[0].mxu0
      %962 = vmatprep.mubr.bf16.mxu0 0
      %963 = vmatmul.mubr.bf16.gmra.mrb[0].mxu0 %v828
      %v964 = vpop.f32.mrb[0].mxu0
      %v965 = vadd.f32 0.0, %v964
      %v966 = vpop.f32.mrb[0].mxu0
      %v967 = vpop.f32.mrb[0].mxu0
      %v968 = vadd.f32 0.0, %v967
      %v969 = vpop.f32.mrb[0].mxu0
      %970 = vmatprep.mubr.bf16.mxu0 0
      %971 = vmatmul.mubr.bf16.gmra.mrb[0].mxu0 %v830
      %v972 = vpop.f32.mrb[0].mxu0
      %v973 = vadd.f32 0.0, %v972
      %v974 = vpop.f32.mrb[0].mxu0
      %v975 = vpop.f32.mrb[0].mxu0
      %v976 = vadd.f32 0.0, %v975
      %v977 = vpop.f32.mrb[0].mxu0
      %978 = vmatprep.mubr.bf16.mxu0 0
      %979 = vmatmul.mubr.bf16.gmra.mrb[0].mxu0 %v832
      %v980 = vpop.f32.mrb[0].mxu0
      %v981 = vadd.f32 0.0, %v980
      %v982 = vpop.f32.mrb[0].mxu0
      %v983 = vpop.f32.mrb[0].mxu0
      %v984 = vadd.f32 0.0, %v983
      %v985 = vpop.f32.mrb[0].mxu0
      %986 = vmatprep.mubr.bf16.mxu0 0
      %987 = vmatmul.mubr.bf16.gmra.mrb[0].mxu0 %v834
      %v988 = vpop.f32.mrb[0].mxu0
      %v989 = vadd.f32 0.0, %v988
      %v990 = vpop.f32.mrb[0].mxu0
      %v991 = vpop.f32.mrb[0].mxu0
      %v992 = vadd.f32 0.0, %v991
      %v993 = vpop.f32.mrb[0].mxu0
      %994 = vmatprep.mubr.bf16.mxu0 0
      %995 = vmatmul.mubr.bf16.gmra.mrb[0].mxu0 %v836
      %v996 = vpop.f32.mrb[0].mxu0
      %v997 = vadd.f32 0.0, %v996
      %v998 = vpop.f32.mrb[0].mxu0
      %v999 = vpop.f32.mrb[0].mxu0
      %v1000 = vadd.f32 0.0, %v999
      %v1001 = vpop.f32.mrb[0].mxu0
      %1002 = vdwg.mxu0
      %v1006 = vunpack.c.l.b16 %v758
      %v1007 = vunpack.c.l.b16 %v759
      %v1008 = vunpack.c.l.b16 %v760
      %v1009 = vpack.c.b16 %v1007, %v1006
      %v1010 = vpack.c.b16 %v1008, %v1008
      %v1012 = vsel %vm805, %v727, 0
      %v1015 = vsel %vm838, %v1010, 0
      %1017 = vmatprep.subr.bf16.mxu0 0
      %1018 = vmatpush1.bf16.msra.mxu0 %v1009
      %1019 = vmatprep.subr.bf16.mxu0 0
      %1020 = vmatpush1.bf16.msra.mxu0 %v1015
      %1021 = vmatprep.subr.bf16.mxu0 0
      %1022 = vmatpush1.bf16.msra.mxu0 0
      %1023 = vmatprep.subr.bf16.mxu0 0
      %1024 = vmatpush1.bf16.msra.mxu0 0
      %1025 = vmatprep.subr.bf16.mxu0 0
      %1026 = vmatpush1.bf16.msra.mxu0 0
      %1027 = vmatprep.subr.bf16.mxu0 0
      %1028 = vmatpush1.bf16.msra.mxu0 0
      %1029 = vmatprep.subr.bf16.mxu0 0
      %1030 = vmatpush1.bf16.msra.mxu0 0
      %1031 = vmatprep.subr.bf16.mxu0 0
      %1032 = vmatpush1.bf16.msra.mxu0 0
      %1033 = vmatprep.subr.bf16.mxu0 0
      %1034 = vmatpush1.bf16.msra.mxu0 0
      %1035 = vmatprep.subr.bf16.mxu0 0
      %1036 = vmatpush1.bf16.msra.mxu0 0
      %1037 = vmatprep.subr.bf16.mxu0 0
      %1038 = vmatpush1.bf16.msra.mxu0 0
      %1039 = vmatprep.subr.bf16.mxu0 0
      %1040 = vmatpush1.bf16.msra.mxu0 0
      %1041 = vmatprep.subr.bf16.mxu0 0
      %1042 = vmatpush1.bf16.msra.mxu0 0
      %1043 = vmatprep.subr.bf16.mxu0 0
      %1044 = vmatpush1.bf16.msra.mxu0 0
      %1045 = vmatprep.subr.bf16.mxu0 0
      %1046 = vmatpush1.bf16.msra.mxu0 0
      %1047 = vmatprep.subr.bf16.mxu0 0
      %1048 = vmatpush1.bf16.msra.mxu0 0
      %1049 = vmatprep.mubr.bf16.mxu0 0
      %1050 = vmatmul.mubr.bf16.gmra.mrb[0].mxu0 %v1012
      %v1051 = vpop.f32.mrb[0].mxu0
      %v1052 = vadd.f32 %v877, %v1051
      %v1053 = vpop.f32.mrb[0].mxu0
      %v1054 = vpop.f32.mrb[0].mxu0
      %v1055 = vadd.f32 %v880, %v1054
      %v1056 = vpop.f32.mrb[0].mxu0
      %1057 = vmatprep.mubr.bf16.mxu0 0
      %1058 = vmatmul.mubr.bf16.gmra.mrb[0].mxu0 %v806
      %v1059 = vpop.f32.mrb[0].mxu0
      %v1060 = vadd.f32 %v885, %v1059
      %v1061 = vpop.f32.mrb[0].mxu0
      %v1062 = vpop.f32.mrb[0].mxu0
      %v1063 = vadd.f32 %v888, %v1062
      %v1064 = vpop.f32.mrb[0].mxu0
      %1065 = vmatprep.mubr.bf16.mxu0 0
      %1066 = vmatmul.mubr.bf16.gmra.mrb[0].mxu0 %v808
      %v1067 = vpop.f32.mrb[0].mxu0
      %v1068 = vadd.f32 %v893, %v1067
      %v1069 = vpop.f32.mrb[0].mxu0
      %v1070 = vpop.f32.mrb[0].mxu0
      %v1071 = vadd.f32 %v896, %v1070
      %v1072 = vpop.f32.mrb[0].mxu0
      %1073 = vmatprep.mubr.bf16.mxu0 0
      %1074 = vmatmul.mubr.bf16.gmra.mrb[0].mxu0 %v810
      %v1075 = vpop.f32.mrb[0].mxu0
      %v1076 = vadd.f32 %v901, %v1075
      %v1077 = vpop.f32.mrb[0].mxu0
      %v1078 = vpop.f32.mrb[0].mxu0
      %v1079 = vadd.f32 %v904, %v1078
      %v1080 = vpop.f32.mrb[0].mxu0
      %1081 = vmatprep.mubr.bf16.mxu0 0
      %1082 = vmatmul.mubr.bf16.gmra.mrb[0].mxu0 %v812
      %v1083 = vpop.f32.mrb[0].mxu0
      %v1084 = vadd.f32 %v909, %v1083
      %v1085 = vpop.f32.mrb[0].mxu0
      %v1086 = vpop.f32.mrb[0].mxu0
      %v1087 = vadd.f32 %v912, %v1086
      %v1088 = vpop.f32.mrb[0].mxu0
      %1089 = vmatprep.mubr.bf16.mxu0 0
      %1090 = vmatmul.mubr.bf16.gmra.mrb[0].mxu0 %v814
      %v1091 = vpop.f32.mrb[0].mxu0
      %v1092 = vadd.f32 %v917, %v1091
      %v1093 = vpop.f32.mrb[0].mxu0
      %v1094 = vpop.f32.mrb[0].mxu0
      %v1095 = vadd.f32 %v920, %v1094
      %v1096 = vpop.f32.mrb[0].mxu0
      %1097 = vmatprep.mubr.bf16.mxu0 0
      %1098 = vmatmul.mubr.bf16.gmra.mrb[0].mxu0 %v816
      %v1099 = vpop.f32.mrb[0].mxu0
      %v1100 = vadd.f32 %v925, %v1099
      %v1101 = vpop.f32.mrb[0].mxu0
      %v1102 = vpop.f32.mrb[0].mxu0
      %v1103 = vadd.f32 %v928, %v1102
      %v1104 = vpop.f32.mrb[0].mxu0
      %1105 = vmatprep.mubr.bf16.mxu0 0
      %1106 = vmatmul.mubr.bf16.gmra.mrb[0].mxu0 %v818
      %v1107 = vpop.f32.mrb[0].mxu0
      %v1108 = vadd.f32 %v933, %v1107
      %v1109 = vpop.f32.mrb[0].mxu0
      %v1110 = vpop.f32.mrb[0].mxu0
      %v1111 = vadd.f32 %v936, %v1110
      %v1112 = vpop.f32.mrb[0].mxu0
      %1113 = vmatprep.mubr.bf16.mxu0 0
      %1114 = vmatmul.mubr.bf16.gmra.mrb[0].mxu0 %v820
      %v1115 = vpop.f32.mrb[0].mxu0
      %v1116 = vadd.f32 %v941, %v1115
      %v1117 = vpop.f32.mrb[0].mxu0
      %v1118 = vpop.f32.mrb[0].mxu0
      %v1119 = vadd.f32 %v944, %v1118
      %v1120 = vpop.f32.mrb[0].mxu0
      %1121 = vmatprep.mubr.bf16.mxu0 0
      %1122 = vmatmul.mubr.bf16.gmra.mrb[0].mxu0 %v822
      %v1123 = vpop.f32.mrb[0].mxu0
      %v1124 = vadd.f32 %v949, %v1123
      %v1125 = vpop.f32.mrb[0].mxu0
      %v1126 = vpop.f32.mrb[0].mxu0
      %v1127 = vadd.f32 %v952, %v1126
      %v1128 = vpop.f32.mrb[0].mxu0
      %1129 = vmatprep.mubr.bf16.mxu0 0
      %1130 = vmatmul.mubr.bf16.gmra.mrb[0].mxu0 %v824
      %v1131 = vpop.f32.mrb[0].mxu0
      %v1132 = vadd.f32 %v957, %v1131
      %v1133 = vpop.f32.mrb[0].mxu0
      %v1134 = vpop.f32.mrb[0].mxu0
      %v1135 = vadd.f32 %v960, %v1134
      %v1136 = vpop.f32.mrb[0].mxu0
      %1137 = vmatprep.mubr.bf16.mxu0 0
      %1138 = vmatmul.mubr.bf16.gmra.mrb[0].mxu0 %v826
      %v1139 = vpop.f32.mrb[0].mxu0
      %v1140 = vadd.f32 %v965, %v1139
      %v1141 = vpop.f32.mrb[0].mxu0
      %v1142 = vpop.f32.mrb[0].mxu0
      %v1143 = vadd.f32 %v968, %v1142
      %v1144 = vpop.f32.mrb[0].mxu0
      %1145 = vmatprep.mubr.bf16.mxu0 0
      %1146 = vmatmul.mubr.bf16.gmra.mrb[0].mxu0 %v828
      %v1147 = vpop.f32.mrb[0].mxu0
      %v1148 = vadd.f32 %v973, %v1147
      %v1149 = vpop.f32.mrb[0].mxu0
      %v1150 = vpop.f32.mrb[0].mxu0
      %v1151 = vadd.f32 %v976, %v1150
      %v1152 = vpop.f32.mrb[0].mxu0
      %1153 = vmatprep.mubr.bf16.mxu0 0
      %1154 = vmatmul.mubr.bf16.gmra.mrb[0].mxu0 %v830
      %v1155 = vpop.f32.mrb[0].mxu0
      %v1156 = vadd.f32 %v981, %v1155
      %v1157 = vpop.f32.mrb[0].mxu0
      %v1158 = vpop.f32.mrb[0].mxu0
      %v1159 = vadd.f32 %v984, %v1158
      %v1160 = vpop.f32.mrb[0].mxu0
      %1161 = vmatprep.mubr.bf16.mxu0 0
      %1162 = vmatmul.mubr.bf16.gmra.mrb[0].mxu0 %v832
      %v1163 = vpop.f32.mrb[0].mxu0
      %v1164 = vadd.f32 %v989, %v1163
      %v1165 = vpop.f32.mrb[0].mxu0
      %v1166 = vpop.f32.mrb[0].mxu0
      %v1167 = vadd.f32 %v992, %v1166
      %v1168 = vpop.f32.mrb[0].mxu0
      %1169 = vmatprep.mubr.bf16.mxu0 0
      %1170 = vmatmul.mubr.bf16.gmra.mrb[0].mxu0 %v834
      %v1171 = vpop.f32.mrb[0].mxu0
      %v1172 = vadd.f32 %v997, %v1171
      %v1173 = vpop.f32.mrb[0].mxu0
      %v1174 = vpop.f32.mrb[0].mxu0
      %v1175 = vadd.f32 %v1000, %v1174
      %v1176 = vpop.f32.mrb[0].mxu0
      %1177 = vdwg.mxu0
      %v1180 = vunpack.c.l.b16 %v255
      %v1181 = vunpack.c.l.b16 %v256
      %v1182 = vpack.c.b16 %v1181, %v1180
      %v1184 = vunpack.c.l.b16 %v257
      %v1185 = vpack.c.b16 %v1184, %v1184
      %v1187 = vshrl.u32 %v1182, 16
      %v1189 = vshll.u32 %v1182, 16
      %v1191 = vrot.slane %v1189, 1
      %v1192 = vor.u32 %v1187, %v1191
      %v1194 = vshll.u32 %v1185, 16
      %v1196 = vrot.slane %v1194, 1
      %v1197 = vsel %vm386, %v1192, %v1196
      %1198 = vrot.lane.b32.xlu0 %v1197, 8
      %v1199 = vpop.permute.xlu0 %1198
      %v1200 = vrot.slane %v1182, 1
      %v1201 = vrot.slane %v1185, 1
      %v1202 = vsel %vm611, %v1200, %v1201
      %1203 = vrot.lane.b32.xlu0 %v1202, 16
      %v1204 = vpop.permute.xlu0 %1203
      %v1206 = vsel %vm692, %v1182, %v1199
      %v1208 = vsel %vm725, %v1206, %v1204
      %s1209 = scalar_lea.vmem %s1, 24
      %v1210 = vld [vmem:[%s1209] sm:$0xf]
      %v1211 = vld [vmem:[%s1209 + $0x4] sm:$0xf]
      %v1212 = vld [vmem:[%s1209 + $0x8] sm:$0xf]
      %v1216 = vunpack.c.l.b16 %v1210
      %v1217 = vunpack.c.l.b16 %v1211
      %v1218 = vunpack.c.l.b16 %v1212
      %v1219 = vpack.c.b16 %v1217, %v1216
      %v1220 = vpack.c.b16 %v1218, %v1218
      %v1222 = vsel %vm805, %v1208, 0
      %v1225 = vsel %vm838, %v1220, 0
      %1227 = vmatprep.subr.bf16.mxu0 0
      %1228 = vmatpush1.bf16.msra.mxu0 %v1219
      %1229 = vmatprep.subr.bf16.mxu0 0
      %1230 = vmatpush1.bf16.msra.mxu0 %v1225
      %1231 = vmatprep.subr.bf16.mxu0 0
      %1232 = vmatpush1.bf16.msra.mxu0 0
      %1233 = vmatprep.subr.bf16.mxu0 0
      %1234 = vmatpush1.bf16.msra.mxu0 0
      %1235 = vmatprep.subr.bf16.mxu0 0
      %1236 = vmatpush1.bf16.msra.mxu0 0
      %1237 = vmatprep.subr.bf16.mxu0 0
      %1238 = vmatpush1.bf16.msra.mxu0 0
      %1239 = vmatprep.subr.bf16.mxu0 0
      %1240 = vmatpush1.bf16.msra.mxu0 0
      %1241 = vmatprep.subr.bf16.mxu0 0
      %1242 = vmatpush1.bf16.msra.mxu0 0
      %1243 = vmatprep.subr.bf16.mxu0 0
      %1244 = vmatpush1.bf16.msra.mxu0 0
      %1245 = vmatprep.subr.bf16.mxu0 0
      %1246 = vmatpush1.bf16.msra.mxu0 0
      %1247 = vmatprep.subr.bf16.mxu0 0
      %1248 = vmatpush1.bf16.msra.mxu0 0
      %1249 = vmatprep.subr.bf16.mxu0 0
      %1250 = vmatpush1.bf16.msra.mxu0 0
      %1251 = vmatprep.subr.bf16.mxu0 0
      %1252 = vmatpush1.bf16.msra.mxu0 0
      %1253 = vmatprep.subr.bf16.mxu0 0
      %1254 = vmatpush1.bf16.msra.mxu0 0
      %1255 = vmatprep.subr.bf16.mxu0 0
      %1256 = vmatpush1.bf16.msra.mxu0 0
      %1257 = vmatprep.subr.bf16.mxu0 0
      %1258 = vmatpush1.bf16.msra.mxu0 0
      %1259 = vmatprep.mubr.bf16.mxu0 0
      %1260 = vmatmul.mubr.bf16.gmra.mrb[0].mxu0 %v808
      %v1261 = vpop.f32.mrb[0].mxu0
      %v1262 = vadd.f32 0.0, %v1261
      %v1263 = vpop.f32.mrb[0].mxu0
      %v1264 = vpop.f32.mrb[0].mxu0
      %v1265 = vadd.f32 0.0, %v1264
      %v1266 = vpop.f32.mrb[0].mxu0
      %1267 = vmatprep.mubr.bf16.mxu0 0
      %1268 = vmatmul.mubr.bf16.gmra.mrb[0].mxu0 %v810
      %v1269 = vpop.f32.mrb[0].mxu0
      %v1270 = vadd.f32 0.0, %v1269
      %v1271 = vpop.f32.mrb[0].mxu0
      %v1272 = vpop.f32.mrb[0].mxu0
      %v1273 = vadd.f32 0.0, %v1272
      %v1274 = vpop.f32.mrb[0].mxu0
      %1275 = vmatprep.mubr.bf16.mxu0 0
      %1276 = vmatmul.mubr.bf16.gmra.mrb[0].mxu0 %v812
      %v1277 = vpop.f32.mrb[0].mxu0
      %v1278 = vadd.f32 0.0, %v1277
      %v1279 = vpop.f32.mrb[0].mxu0
      %v1280 = vpop.f32.mrb[0].mxu0
      %v1281 = vadd.f32 0.0, %v1280
      %v1282 = vpop.f32.mrb[0].mxu0
      %1283 = vmatprep.mubr.bf16.mxu0 0
      %1284 = vmatmul.mubr.bf16.gmra.mrb[0].mxu0 %v814
      %v1285 = vpop.f32.mrb[0].mxu0
      %v1286 = vadd.f32 0.0, %v1285
      %v1287 = vpop.f32.mrb[0].mxu0
      %v1288 = vpop.f32.mrb[0].mxu0
      %v1289 = vadd.f32 0.0, %v1288
      %v1290 = vpop.f32.mrb[0].mxu0
      %1291 = vmatprep.mubr.bf16.mxu0 0
      %1292 = vmatmul.mubr.bf16.gmra.mrb[0].mxu0 %v816
      %v1293 = vpop.f32.mrb[0].mxu0
      %v1294 = vadd.f32 0.0, %v1293
      %v1295 = vpop.f32.mrb[0].mxu0
      %v1296 = vpop.f32.mrb[0].mxu0
      %v1297 = vadd.f32 0.0, %v1296
      %v1298 = vpop.f32.mrb[0].mxu0
      %1299 = vmatprep.mubr.bf16.mxu0 0
      %1300 = vmatmul.mubr.bf16.gmra.mrb[0].mxu0 %v818
      %v1301 = vpop.f32.mrb[0].mxu0
      %v1302 = vadd.f32 0.0, %v1301
      %v1303 = vpop.f32.mrb[0].mxu0
      %v1304 = vpop.f32.mrb[0].mxu0
      %v1305 = vadd.f32 0.0, %v1304
      %v1306 = vpop.f32.mrb[0].mxu0
      %1307 = vmatprep.mubr.bf16.mxu0 0
      %1308 = vmatmul.mubr.bf16.gmra.mrb[0].mxu0 %v820
      %v1309 = vpop.f32.mrb[0].mxu0
      %v1310 = vadd.f32 0.0, %v1309
      %v1311 = vpop.f32.mrb[0].mxu0
      %v1312 = vpop.f32.mrb[0].mxu0
      %v1313 = vadd.f32 0.0, %v1312
      %v1314 = vpop.f32.mrb[0].mxu0
      %1315 = vmatprep.mubr.bf16.mxu0 0
      %1316 = vmatmul.mubr.bf16.gmra.mrb[0].mxu0 %v822
      %v1317 = vpop.f32.mrb[0].mxu0
      %v1318 = vadd.f32 0.0, %v1317
      %v1319 = vpop.f32.mrb[0].mxu0
      %v1320 = vpop.f32.mrb[0].mxu0
      %v1321 = vadd.f32 0.0, %v1320
      %v1322 = vpop.f32.mrb[0].mxu0
      %1323 = vmatprep.mubr.bf16.mxu0 0
      %1324 = vmatmul.mubr.bf16.gmra.mrb[0].mxu0 %v824
      %v1325 = vpop.f32.mrb[0].mxu0
      %v1326 = vadd.f32 0.0, %v1325
      %v1327 = vpop.f32.mrb[0].mxu0
      %v1328 = vpop.f32.mrb[0].mxu0
      %v1329 = vadd.f32 0.0, %v1328
      %v1330 = vpop.f32.mrb[0].mxu0
      %1331 = vmatprep.mubr.bf16.mxu0 0
      %1332 = vmatmul.mubr.bf16.gmra.mrb[0].mxu0 %v826
      %v1333 = vpop.f32.mrb[0].mxu0
      %v1334 = vadd.f32 0.0, %v1333
      %v1335 = vpop.f32.mrb[0].mxu0
      %v1336 = vpop.f32.mrb[0].mxu0
      %v1337 = vadd.f32 0.0, %v1336
      %v1338 = vpop.f32.mrb[0].mxu0
      %1339 = vmatprep.mubr.bf16.mxu0 0
      %1340 = vmatmul.mubr.bf16.gmra.mrb[0].mxu0 %v828
      %v1341 = vpop.f32.mrb[0].mxu0
      %v1342 = vadd.f32 0.0, %v1341
      %v1343 = vpop.f32.mrb[0].mxu0
      %v1344 = vpop.f32.mrb[0].mxu0
      %v1345 = vadd.f32 0.0, %v1344
      %v1346 = vpop.f32.mrb[0].mxu0
      %1347 = vmatprep.mubr.bf16.mxu0 0
      %1348 = vmatmul.mubr.bf16.gmra.mrb[0].mxu0 %v830
      %v1349 = vpop.f32.mrb[0].mxu0
      %v1350 = vadd.f32 0.0, %v1349
      %v1351 = vpop.f32.mrb[0].mxu0
      %v1352 = vpop.f32.mrb[0].mxu0
      %v1353 = vadd.f32 0.0, %v1352
      %v1354 = vpop.f32.mrb[0].mxu0
      %1355 = vmatprep.mubr.bf16.mxu0 0
      %1356 = vmatmul.mubr.bf16.gmra.mrb[0].mxu0 %v832
      %v1357 = vpop.f32.mrb[0].mxu0
      %v1358 = vadd.f32 0.0, %v1357
      %v1359 = vpop.f32.mrb[0].mxu0
      %v1360 = vpop.f32.mrb[0].mxu0
      %v1361 = vadd.f32 0.0, %v1360
      %v1362 = vpop.f32.mrb[0].mxu0
      %1363 = vmatprep.mubr.bf16.mxu0 0
      %1364 = vmatmul.mubr.bf16.gmra.mrb[0].mxu0 %v834
      %v1365 = vpop.f32.mrb[0].mxu0
      %v1366 = vadd.f32 0.0, %v1365
      %v1367 = vpop.f32.mrb[0].mxu0
      %v1368 = vpop.f32.mrb[0].mxu0
      %v1369 = vadd.f32 0.0, %v1368
      %v1370 = vpop.f32.mrb[0].mxu0
      %1371 = vmatprep.mubr.bf16.mxu0 0
      %1372 = vmatmul.mubr.bf16.gmra.mrb[0].mxu0 %v836
      %v1373 = vpop.f32.mrb[0].mxu0
      %v1374 = vadd.f32 0.0, %v1373
      %v1375 = vpop.f32.mrb[0].mxu0
      %v1376 = vpop.f32.mrb[0].mxu0
      %v1377 = vadd.f32 0.0, %v1376
      %v1378 = vpop.f32.mrb[0].mxu0
      %1379 = vmatprep.mubr.bf16.mxu0 0
      %1380 = vmatmul.mubr.bf16.gmra.mrb[0].mxu0 %v1222
      %v1381 = vpop.f32.mrb[0].mxu0
      %v1382 = vadd.f32 0.0, %v1381
      %v1383 = vpop.f32.mrb[0].mxu0
      %v1384 = vpop.f32.mrb[0].mxu0
      %v1385 = vadd.f32 0.0, %v1384
      %v1386 = vpop.f32.mrb[0].mxu0
      %1387 = vdwg.mxu0
      %v1388 = vadd.f32 %v1052, %v1262
      %v1389 = vadd.f32 %v1055, %v1265
      %v1390 = vadd.f32 %v1060, %v1270
      %v1391 = vadd.f32 %v1063, %v1273
      %v1392 = vadd.f32 %v1068, %v1278
      %v1393 = vadd.f32 %v1071, %v1281
      %v1394 = vadd.f32 %v1076, %v1286
      %v1395 = vadd.f32 %v1079, %v1289
      %v1396 = vadd.f32 %v1084, %v1294
      %v1397 = vadd.f32 %v1087, %v1297
      %v1398 = vadd.f32 %v1092, %v1302
      %v1399 = vadd.f32 %v1095, %v1305
      %v1400 = vadd.f32 %v1100, %v1310
      %v1401 = vadd.f32 %v1103, %v1313
      %v1402 = vadd.f32 %v1108, %v1318
      %v1403 = vadd.f32 %v1111, %v1321
      %v1404 = vadd.f32 %v1116, %v1326
      %v1405 = vadd.f32 %v1119, %v1329
      %v1406 = vadd.f32 %v1124, %v1334
      %v1407 = vadd.f32 %v1127, %v1337
      %v1408 = vadd.f32 %v1132, %v1342
      %v1409 = vadd.f32 %v1135, %v1345
      %v1410 = vadd.f32 %v1140, %v1350
      %v1411 = vadd.f32 %v1143, %v1353
      %v1412 = vadd.f32 %v1148, %v1358
      %v1413 = vadd.f32 %v1151, %v1361
      %v1414 = vadd.f32 %v1156, %v1366
      %v1415 = vadd.f32 %v1159, %v1369
      %v1416 = vadd.f32 %v1164, %v1374
      %v1417 = vadd.f32 %v1167, %v1377
      %v1418 = vadd.f32 %v1172, %v1382
      %v1419 = vadd.f32 %v1175, %v1385
      %v1420 = vld [vmem:[%s2] sm:$0x1]
      %v1422 = vlaneseq
      %v1423 = vshrl.u32 %v1422, 7
      %v1424 = vsub.s32 0, %v1423
      %v1425 = vrot.slane %v1420, %v1424
      %v1427 = vadd.f32 %v1388, %v1425
      %v1428 = vadd.f32 %v1389, %v1425
      %v1429 = vadd.f32 %v1390, %v1425
      %v1430 = vadd.f32 %v1391, %v1425
      %v1431 = vadd.f32 %v1392, %v1425
      %v1432 = vadd.f32 %v1393, %v1425
      %v1433 = vadd.f32 %v1394, %v1425
      %v1434 = vadd.f32 %v1395, %v1425
      %v1435 = vadd.f32 %v1396, %v1425
      %v1436 = vadd.f32 %v1397, %v1425
      %v1437 = vadd.f32 %v1398, %v1425
      %v1438 = vadd.f32 %v1399, %v1425
      %v1439 = vadd.f32 %v1400, %v1425
      %v1440 = vadd.f32 %v1401, %v1425
      %v1441 = vadd.f32 %v1402, %v1425
      %v1442 = vadd.f32 %v1403, %v1425
      %v1443 = vadd.f32 %v1404, %v1425
      %v1444 = vadd.f32 %v1405, %v1425
      %v1445 = vadd.f32 %v1406, %v1425
      %v1446 = vadd.f32 %v1407, %v1425
      %v1447 = vadd.f32 %v1408, %v1425
      %v1448 = vadd.f32 %v1409, %v1425
      %v1449 = vadd.f32 %v1410, %v1425
      %v1450 = vadd.f32 %v1411, %v1425
      %v1451 = vadd.f32 %v1412, %v1425
      %v1452 = vadd.f32 %v1413, %v1425
      %v1453 = vadd.f32 %v1414, %v1425
      %v1454 = vadd.f32 %v1415, %v1425
      %v1455 = vadd.f32 %v1416, %v1425
      %v1456 = vadd.f32 %v1417, %v1425
      %v1457 = vadd.f32 %v1418, %v1425
      %v1458 = vadd.f32 %v1419, %v1425
      %v1459 = vxor.u32 %v1427, 2147483648
      %v1460 = vxor.u32 %v1428, 2147483648
      %v1461 = vxor.u32 %v1429, 2147483648
      %v1462 = vxor.u32 %v1430, 2147483648
      %v1463 = vxor.u32 %v1431, 2147483648
      %v1464 = vxor.u32 %v1432, 2147483648
      %v1465 = vxor.u32 %v1433, 2147483648
      %v1466 = vxor.u32 %v1434, 2147483648
      %v1467 = vxor.u32 %v1435, 2147483648
      %v1468 = vxor.u32 %v1436, 2147483648
      %v1469 = vxor.u32 %v1437, 2147483648
      %v1470 = vxor.u32 %v1438, 2147483648
      %v1471 = vxor.u32 %v1439, 2147483648
      %v1472 = vxor.u32 %v1440, 2147483648
      %v1473 = vxor.u32 %v1441, 2147483648
      %v1474 = vxor.u32 %v1442, 2147483648
      %v1475 = vxor.u32 %v1443, 2147483648
      %v1476 = vxor.u32 %v1444, 2147483648
      %v1477 = vxor.u32 %v1445, 2147483648
      %v1478 = vxor.u32 %v1446, 2147483648
      %v1479 = vxor.u32 %v1447, 2147483648
      %v1480 = vxor.u32 %v1448, 2147483648
      %v1481 = vxor.u32 %v1449, 2147483648
      %v1482 = vxor.u32 %v1450, 2147483648
      %v1483 = vxor.u32 %v1451, 2147483648
      %v1484 = vxor.u32 %v1452, 2147483648
      %v1485 = vxor.u32 %v1453, 2147483648
      %v1486 = vxor.u32 %v1454, 2147483648
      %v1487 = vxor.u32 %v1455, 2147483648
      %v1488 = vxor.u32 %v1456, 2147483648
      %v1489 = vxor.u32 %v1457, 2147483648
      %v1490 = vxor.u32 %v1458, 2147483648
      %v1491 = vmul.f32 %v1459, 1.442695
      %v1492 = vpow.pop %v1491
      %v1493 = vmul.f32 %v1460, 1.442695
      %v1494 = vpow.pop %v1493
      %v1495 = vmul.f32 %v1461, 1.442695
      %v1496 = vpow.pop %v1495
      %v1497 = vmul.f32 %v1462, 1.442695
      %v1498 = vpow.pop %v1497
      %v1499 = vmul.f32 %v1463, 1.442695
      %v1500 = vpow.pop %v1499
      %v1501 = vmul.f32 %v1464, 1.442695
      %v1502 = vpow.pop %v1501
      %v1503 = vmul.f32 %v1465, 1.442695
      %v1504 = vpow.pop %v1503
      %v1505 = vmul.f32 %v1466, 1.442695
      %v1506 = vpow.pop %v1505
      %v1507 = vmul.f32 %v1467, 1.442695
      %v1508 = vpow.pop %v1507
      %v1509 = vmul.f32 %v1468, 1.442695
      %v1510 = vpow.pop %v1509
      %v1511 = vmul.f32 %v1469, 1.442695
      %v1512 = vpow.pop %v1511
      %v1513 = vmul.f32 %v1470, 1.442695
      %v1514 = vpow.pop %v1513
      %v1515 = vmul.f32 %v1471, 1.442695
      %v1516 = vpow.pop %v1515
      %v1517 = vmul.f32 %v1472, 1.442695
      %v1518 = vpow.pop %v1517
      %v1519 = vmul.f32 %v1473, 1.442695
      %v1520 = vpow.pop %v1519
      %v1521 = vmul.f32 %v1474, 1.442695
      %v1522 = vpow.pop %v1521
      %v1523 = vmul.f32 %v1475, 1.442695
      %v1524 = vpow.pop %v1523
      %v1525 = vmul.f32 %v1476, 1.442695
      %v1526 = vpow.pop %v1525
      %v1527 = vmul.f32 %v1477, 1.442695
      %v1528 = vpow.pop %v1527
      %v1529 = vmul.f32 %v1478, 1.442695
      %v1530 = vpow.pop %v1529
      %v1531 = vmul.f32 %v1479, 1.442695
      %v1532 = vpow.pop %v1531
      %v1533 = vmul.f32 %v1480, 1.442695
      %v1534 = vpow.pop %v1533
      %v1535 = vmul.f32 %v1481, 1.442695
      %v1536 = vpow.pop %v1535
      %v1537 = vmul.f32 %v1482, 1.442695
      %v1538 = vpow.pop %v1537
      %v1539 = vmul.f32 %v1483, 1.442695
      %v1540 = vpow.pop %v1539
      %v1541 = vmul.f32 %v1484, 1.442695
      %v1542 = vpow.pop %v1541
      %v1543 = vmul.f32 %v1485, 1.442695
      %v1544 = vpow.pop %v1543
      %v1545 = vmul.f32 %v1486, 1.442695
      %v1546 = vpow.pop %v1545
      %v1547 = vmul.f32 %v1487, 1.442695
      %v1548 = vpow.pop %v1547
      %v1549 = vmul.f32 %v1488, 1.442695
      %v1550 = vpow.pop %v1549
      %v1551 = vmul.f32 %v1489, 1.442695
      %v1552 = vpow.pop %v1551
      %v1553 = vmul.f32 %v1490, 1.442695
      %v1554 = vpow.pop %v1553
      %v1555 = vadd.f32 %v1492, 1.0
      %v1556 = vadd.f32 %v1494, 1.0
      %v1557 = vadd.f32 %v1496, 1.0
      %v1558 = vadd.f32 %v1498, 1.0
      %v1559 = vadd.f32 %v1500, 1.0
      %v1560 = vadd.f32 %v1502, 1.0
      %v1561 = vadd.f32 %v1504, 1.0
      %v1562 = vadd.f32 %v1506, 1.0
      %v1563 = vadd.f32 %v1508, 1.0
      %v1564 = vadd.f32 %v1510, 1.0
      %v1565 = vadd.f32 %v1512, 1.0
      %v1566 = vadd.f32 %v1514, 1.0
      %v1567 = vadd.f32 %v1516, 1.0
      %v1568 = vadd.f32 %v1518, 1.0
      %v1569 = vadd.f32 %v1520, 1.0
      %v1570 = vadd.f32 %v1522, 1.0
      %v1571 = vadd.f32 %v1524, 1.0
      %v1572 = vadd.f32 %v1526, 1.0
      %v1573 = vadd.f32 %v1528, 1.0
      %v1574 = vadd.f32 %v1530, 1.0
      %v1575 = vadd.f32 %v1532, 1.0
      %v1576 = vadd.f32 %v1534, 1.0
      %v1577 = vadd.f32 %v1536, 1.0
      %v1578 = vadd.f32 %v1538, 1.0
      %v1579 = vadd.f32 %v1540, 1.0
      %v1580 = vadd.f32 %v1542, 1.0
      %v1581 = vadd.f32 %v1544, 1.0
      %v1582 = vadd.f32 %v1546, 1.0
      %v1583 = vadd.f32 %v1548, 1.0
      %v1584 = vadd.f32 %v1550, 1.0
      %v1585 = vadd.f32 %v1552, 1.0
      %v1586 = vadd.f32 %v1554, 1.0
      %v1587 = vrcp.pop %v1555
      %v1588 = vmul.f32 1.0, %v1587
      %v1589 = vrcp.pop %v1556
      %v1590 = vmul.f32 1.0, %v1589
      %v1591 = vrcp.pop %v1557
      %v1592 = vmul.f32 1.0, %v1591
      %v1593 = vrcp.pop %v1558
      %v1594 = vmul.f32 1.0, %v1593
      %v1595 = vrcp.pop %v1559
      %v1596 = vmul.f32 1.0, %v1595
      %v1597 = vrcp.pop %v1560
      %v1598 = vmul.f32 1.0, %v1597
      %v1599 = vrcp.pop %v1561
      %v1600 = vmul.f32 1.0, %v1599
      %v1601 = vrcp.pop %v1562
      %v1602 = vmul.f32 1.0, %v1601
      %v1603 = vrcp.pop %v1563
      %v1604 = vmul.f32 1.0, %v1603
      %v1605 = vrcp.pop %v1564
      %v1606 = vmul.f32 1.0, %v1605
      %v1607 = vrcp.pop %v1565
      %v1608 = vmul.f32 1.0, %v1607
      %v1609 = vrcp.pop %v1566
      %v1610 = vmul.f32 1.0, %v1609
      %v1611 = vrcp.pop %v1567
      %v1612 = vmul.f32 1.0, %v1611
      %v1613 = vrcp.pop %v1568
      %v1614 = vmul.f32 1.0, %v1613
      %v1615 = vrcp.pop %v1569
      %v1616 = vmul.f32 1.0, %v1615
      %v1617 = vrcp.pop %v1570
      %v1618 = vmul.f32 1.0, %v1617
      %v1619 = vrcp.pop %v1571
      %v1620 = vmul.f32 1.0, %v1619
      %v1621 = vrcp.pop %v1572
      %v1622 = vmul.f32 1.0, %v1621
      %v1623 = vrcp.pop %v1573
      %v1624 = vmul.f32 1.0, %v1623
      %v1625 = vrcp.pop %v1574
      %v1626 = vmul.f32 1.0, %v1625
      %v1627 = vrcp.pop %v1575
      %v1628 = vmul.f32 1.0, %v1627
      %v1629 = vrcp.pop %v1576
      %v1630 = vmul.f32 1.0, %v1629
      %v1631 = vrcp.pop %v1577
      %v1632 = vmul.f32 1.0, %v1631
      %v1633 = vrcp.pop %v1578
      %v1634 = vmul.f32 1.0, %v1633
      %v1635 = vrcp.pop %v1579
      %v1636 = vmul.f32 1.0, %v1635
      %v1637 = vrcp.pop %v1580
      %v1638 = vmul.f32 1.0, %v1637
      %v1639 = vrcp.pop %v1581
      %v1640 = vmul.f32 1.0, %v1639
      %v1641 = vrcp.pop %v1582
      %v1642 = vmul.f32 1.0, %v1641
      %v1643 = vrcp.pop %v1583
      %v1644 = vmul.f32 1.0, %v1643
      %v1645 = vrcp.pop %v1584
      %v1646 = vmul.f32 1.0, %v1645
      %v1647 = vrcp.pop %v1585
      %v1648 = vmul.f32 1.0, %v1647
      %v1649 = vrcp.pop %v1586
      %v1650 = vmul.f32 1.0, %v1649
      %vm1651 = vsmask.f32 3328
      %vm1652 = vsmask.f32 7440
      %vm1653 = vmor %vm1651, %vm1652
      %v1655 = vshrl.u32 %v207, 16
      %v1657 = vrot.slane %v1655, 4
      %v1658 = vshll.u32 %v207, 16
      %v1660 = vrot.slane %v1658, 5
      %v1661 = vor.u32 %v1657, %v1660
      %v1662 = vrot.slane %v1661, 4
      %v1664 = vshll.u32 %v208, 16
      %v1666 = vrot.slane %v1664, 5
      %v1667 = vsel %vm1653, %v1662, %v1666
      %v1668 = vshrl.u32 %v208, 16
      %v1670 = vrot.slane %v1668, 4
      %v1671 = vor.u32 %v1670, %v1666
      %v1672 = vrot.slane %v1671, 4
      %v1674 = vshll.u32 %v209, 16
      %v1676 = vrot.slane %v1674, 5
      %v1677 = vsel %vm1653, %v1672, %v1676
      %v1679 = vshrl.u32 %v210, 16
      %v1681 = vrot.slane %v1679, 4
      %v1682 = vshll.u32 %v210, 16
      %v1684 = vrot.slane %v1682, 5
      %v1685 = vor.u32 %v1681, %v1684
      %v1686 = vrot.slane %v1685, 4
      %v1688 = vshll.u32 %v211, 16
      %v1690 = vrot.slane %v1688, 5
      %v1691 = vsel %vm1653, %v1686, %v1690
      %v1692 = vshrl.u32 %v211, 16
      %v1694 = vrot.slane %v1692, 4
      %v1695 = vor.u32 %v1694, %v1690
      %v1696 = vrot.slane %v1695, 4
      %v1698 = vshll.u32 %v212, 16
      %v1700 = vrot.slane %v1698, 5
      %v1701 = vsel %vm1653, %v1696, %v1700
      %v1703 = vshrl.u32 %v213, 16
      %v1705 = vrot.slane %v1703, 4
      %v1706 = vshll.u32 %v213, 16
      %v1708 = vrot.slane %v1706, 5
      %v1709 = vor.u32 %v1705, %v1708
      %v1710 = vrot.slane %v1709, 4
      %v1712 = vshll.u32 %v214, 16
      %v1714 = vrot.slane %v1712, 5
      %v1715 = vsel %vm1653, %v1710, %v1714
      %v1716 = vshrl.u32 %v214, 16
      %v1718 = vrot.slane %v1716, 4
      %v1719 = vor.u32 %v1718, %v1714
      %v1720 = vrot.slane %v1719, 4
      %v1722 = vshll.u32 %v215, 16
      %v1724 = vrot.slane %v1722, 5
      %v1725 = vsel %vm1653, %v1720, %v1724
      %v1727 = vshrl.u32 %v216, 16
      %v1729 = vrot.slane %v1727, 4
      %v1730 = vshll.u32 %v216, 16
      %v1732 = vrot.slane %v1730, 5
      %v1733 = vor.u32 %v1729, %v1732
      %v1734 = vrot.slane %v1733, 4
      %v1736 = vshll.u32 %v217, 16
      %v1738 = vrot.slane %v1736, 5
      %v1739 = vsel %vm1653, %v1734, %v1738
      %v1740 = vshrl.u32 %v217, 16
      %v1742 = vrot.slane %v1740, 4
      %v1743 = vor.u32 %v1742, %v1738
      %v1744 = vrot.slane %v1743, 4
      %v1746 = vshll.u32 %v218, 16
      %v1748 = vrot.slane %v1746, 5
      %v1749 = vsel %vm1653, %v1744, %v1748
      %v1751 = vshrl.u32 %v219, 16
      %v1753 = vrot.slane %v1751, 4
      %v1754 = vshll.u32 %v219, 16
      %v1756 = vrot.slane %v1754, 5
      %v1757 = vor.u32 %v1753, %v1756
      %v1758 = vrot.slane %v1757, 4
      %v1760 = vshll.u32 %v220, 16
      %v1762 = vrot.slane %v1760, 5
      %v1763 = vsel %vm1653, %v1758, %v1762
      %v1764 = vshrl.u32 %v220, 16
      %v1766 = vrot.slane %v1764, 4
      %v1767 = vor.u32 %v1766, %v1762
      %v1768 = vrot.slane %v1767, 4
      %v1770 = vshll.u32 %v221, 16
      %v1772 = vrot.slane %v1770, 5
      %v1773 = vsel %vm1653, %v1768, %v1772
      %v1775 = vshrl.u32 %v222, 16
      %v1777 = vrot.slane %v1775, 4
      %v1778 = vshll.u32 %v222, 16
      %v1780 = vrot.slane %v1778, 5
      %v1781 = vor.u32 %v1777, %v1780
      %v1782 = vrot.slane %v1781, 4
      %v1784 = vshll.u32 %v223, 16
      %v1786 = vrot.slane %v1784, 5
      %v1787 = vsel %vm1653, %v1782, %v1786
      %v1788 = vshrl.u32 %v223, 16
      %v1790 = vrot.slane %v1788, 4
      %v1791 = vor.u32 %v1790, %v1786
      %v1792 = vrot.slane %v1791, 4
      %v1794 = vshll.u32 %v224, 16
      %v1796 = vrot.slane %v1794, 5
      %v1797 = vsel %vm1653, %v1792, %v1796
      %v1799 = vshrl.u32 %v225, 16
      %v1801 = vrot.slane %v1799, 4
      %v1802 = vshll.u32 %v225, 16
      %v1804 = vrot.slane %v1802, 5
      %v1805 = vor.u32 %v1801, %v1804
      %v1806 = vrot.slane %v1805, 4
      %v1808 = vshll.u32 %v226, 16
      %v1810 = vrot.slane %v1808, 5
      %v1811 = vsel %vm1653, %v1806, %v1810
      %v1812 = vshrl.u32 %v226, 16
      %v1814 = vrot.slane %v1812, 4
      %v1815 = vor.u32 %v1814, %v1810
      %v1816 = vrot.slane %v1815, 4
      %v1818 = vshll.u32 %v227, 16
      %v1820 = vrot.slane %v1818, 5
      %v1821 = vsel %vm1653, %v1816, %v1820
      %v1823 = vshrl.u32 %v228, 16
      %v1825 = vrot.slane %v1823, 4
      %v1826 = vshll.u32 %v228, 16
      %v1828 = vrot.slane %v1826, 5
      %v1829 = vor.u32 %v1825, %v1828
      %v1830 = vrot.slane %v1829, 4
      %v1832 = vshll.u32 %v229, 16
      %v1834 = vrot.slane %v1832, 5
      %v1835 = vsel %vm1653, %v1830, %v1834
      %v1836 = vshrl.u32 %v229, 16
      %v1838 = vrot.slane %v1836, 4
      %v1839 = vor.u32 %v1838, %v1834
      %v1840 = vrot.slane %v1839, 4
      %v1842 = vshll.u32 %v230, 16
      %v1844 = vrot.slane %v1842, 5
      %v1845 = vsel %vm1653, %v1840, %v1844
      %v1847 = vshrl.u32 %v231, 16
      %v1849 = vrot.slane %v1847, 4
      %v1850 = vshll.u32 %v231, 16
      %v1852 = vrot.slane %v1850, 5
      %v1853 = vor.u32 %v1849, %v1852
      %v1854 = vrot.slane %v1853, 4
      %v1856 = vshll.u32 %v232, 16
      %v1858 = vrot.slane %v1856, 5
      %v1859 = vsel %vm1653, %v1854, %v1858
      %v1860 = vshrl.u32 %v232, 16
      %v1862 = vrot.slane %v1860, 4
      %v1863 = vor.u32 %v1862, %v1858
      %v1864 = vrot.slane %v1863, 4
      %v1866 = vshll.u32 %v233, 16
      %v1868 = vrot.slane %v1866, 5
      %v1869 = vsel %vm1653, %v1864, %v1868
      %v1871 = vshrl.u32 %v234, 16
      %v1873 = vrot.slane %v1871, 4
      %v1874 = vshll.u32 %v234, 16
      %v1876 = vrot.slane %v1874, 5
      %v1877 = vor.u32 %v1873, %v1876
      %v1878 = vrot.slane %v1877, 4
      %v1880 = vshll.u32 %v235, 16
      %v1882 = vrot.slane %v1880, 5
      %v1883 = vsel %vm1653, %v1878, %v1882
      %v1884 = vshrl.u32 %v235, 16
      %v1886 = vrot.slane %v1884, 4
      %v1887 = vor.u32 %v1886, %v1882
      %v1888 = vrot.slane %v1887, 4
      %v1890 = vshll.u32 %v236, 16
      %v1892 = vrot.slane %v1890, 5
      %v1893 = vsel %vm1653, %v1888, %v1892
      %v1895 = vshrl.u32 %v237, 16
      %v1897 = vrot.slane %v1895, 4
      %v1898 = vshll.u32 %v237, 16
      %v1900 = vrot.slane %v1898, 5
      %v1901 = vor.u32 %v1897, %v1900
      %v1902 = vrot.slane %v1901, 4
      %v1904 = vshll.u32 %v238, 16
      %v1906 = vrot.slane %v1904, 5
      %v1907 = vsel %vm1653, %v1902, %v1906
      %v1908 = vshrl.u32 %v238, 16
      %v1910 = vrot.slane %v1908, 4
      %v1911 = vor.u32 %v1910, %v1906
      %v1912 = vrot.slane %v1911, 4
      %v1914 = vshll.u32 %v239, 16
      %v1916 = vrot.slane %v1914, 5
      %v1917 = vsel %vm1653, %v1912, %v1916
      %v1919 = vshrl.u32 %v240, 16
      %v1921 = vrot.slane %v1919, 4
      %v1922 = vshll.u32 %v240, 16
      %v1924 = vrot.slane %v1922, 5
      %v1925 = vor.u32 %v1921, %v1924
      %v1926 = vrot.slane %v1925, 4
      %v1928 = vshll.u32 %v241, 16
      %v1930 = vrot.slane %v1928, 5
      %v1931 = vsel %vm1653, %v1926, %v1930
      %v1932 = vshrl.u32 %v241, 16
      %v1934 = vrot.slane %v1932, 4
      %v1935 = vor.u32 %v1934, %v1930
      %v1936 = vrot.slane %v1935, 4
      %v1938 = vshll.u32 %v242, 16
      %v1940 = vrot.slane %v1938, 5
      %v1941 = vsel %vm1653, %v1936, %v1940
      %v1943 = vshrl.u32 %v243, 16
      %v1945 = vrot.slane %v1943, 4
      %v1946 = vshll.u32 %v243, 16
      %v1948 = vrot.slane %v1946, 5
      %v1949 = vor.u32 %v1945, %v1948
      %v1950 = vrot.slane %v1949, 4
      %v1952 = vshll.u32 %v244, 16
      %v1954 = vrot.slane %v1952, 5
      %v1955 = vsel %vm1653, %v1950, %v1954
      %v1956 = vshrl.u32 %v244, 16
      %v1958 = vrot.slane %v1956, 4
      %v1959 = vor.u32 %v1958, %v1954
      %v1960 = vrot.slane %v1959, 4
      %v1962 = vshll.u32 %v245, 16
      %v1964 = vrot.slane %v1962, 5
      %v1965 = vsel %vm1653, %v1960, %v1964
      %v1967 = vshrl.u32 %v246, 16
      %v1969 = vrot.slane %v1967, 4
      %v1970 = vshll.u32 %v246, 16
      %v1972 = vrot.slane %v1970, 5
      %v1973 = vor.u32 %v1969, %v1972
      %v1974 = vrot.slane %v1973, 4
      %v1976 = vshll.u32 %v247, 16
      %v1978 = vrot.slane %v1976, 5
      %v1979 = vsel %vm1653, %v1974, %v1978
      %v1980 = vshrl.u32 %v247, 16
      %v1982 = vrot.slane %v1980, 4
      %v1983 = vor.u32 %v1982, %v1978
      %v1984 = vrot.slane %v1983, 4
      %v1986 = vshll.u32 %v248, 16
      %v1988 = vrot.slane %v1986, 5
      %v1989 = vsel %vm1653, %v1984, %v1988
      %v1991 = vshrl.u32 %v249, 16
      %v1993 = vrot.slane %v1991, 4
      %v1994 = vshll.u32 %v249, 16
      %v1996 = vrot.slane %v1994, 5
      %v1997 = vor.u32 %v1993, %v1996
      %v1998 = vrot.slane %v1997, 4
      %v2000 = vshll.u32 %v250, 16
      %v2002 = vrot.slane %v2000, 5
      %v2003 = vsel %vm1653, %v1998, %v2002
      %v2004 = vshrl.u32 %v250, 16
      %v2006 = vrot.slane %v2004, 4
      %v2007 = vor.u32 %v2006, %v2002
      %v2008 = vrot.slane %v2007, 4
      %v2010 = vshll.u32 %v251, 16
      %v2012 = vrot.slane %v2010, 5
      %v2013 = vsel %vm1653, %v2008, %v2012
      %v2015 = vshrl.u32 %v252, 16
      %v2017 = vrot.slane %v2015, 4
      %v2018 = vshll.u32 %v252, 16
      %v2020 = vrot.slane %v2018, 5
      %v2021 = vor.u32 %v2017, %v2020
      %v2022 = vrot.slane %v2021, 4
      %v2024 = vshll.u32 %v253, 16
      %v2026 = vrot.slane %v2024, 5
      %v2027 = vsel %vm1653, %v2022, %v2026
      %v2028 = vshrl.u32 %v253, 16
      %v2030 = vrot.slane %v2028, 4
      %v2031 = vor.u32 %v2030, %v2026
      %v2032 = vrot.slane %v2031, 4
      %v2034 = vshll.u32 %v254, 16
      %v2036 = vrot.slane %v2034, 5
      %v2037 = vsel %vm1653, %v2032, %v2036
      %v2070 = vunpack.c.l.bf16 %v1667
      %v2071 = vunpack.c.l.bf16 %v1677
      %v2072 = vunpack.c.l.bf16 %v1691
      %v2073 = vunpack.c.l.bf16 %v1701
      %v2074 = vunpack.c.l.bf16 %v1715
      %v2075 = vunpack.c.l.bf16 %v1725
      %v2076 = vunpack.c.l.bf16 %v1739
      %v2077 = vunpack.c.l.bf16 %v1749
      %v2078 = vunpack.c.l.bf16 %v1763
      %v2079 = vunpack.c.l.bf16 %v1773
      %v2080 = vunpack.c.l.bf16 %v1787
      %v2081 = vunpack.c.l.bf16 %v1797
      %v2082 = vunpack.c.l.bf16 %v1811
      %v2083 = vunpack.c.l.bf16 %v1821
      %v2084 = vunpack.c.l.bf16 %v1835
      %v2085 = vunpack.c.l.bf16 %v1845
      %v2086 = vunpack.c.l.bf16 %v1859
      %v2087 = vunpack.c.l.bf16 %v1869
      %v2088 = vunpack.c.l.bf16 %v1883
      %v2089 = vunpack.c.l.bf16 %v1893
      %v2090 = vunpack.c.l.bf16 %v1907
      %v2091 = vunpack.c.l.bf16 %v1917
      %v2092 = vunpack.c.l.bf16 %v1931
      %v2093 = vunpack.c.l.bf16 %v1941
      %v2094 = vunpack.c.l.bf16 %v1955
      %v2095 = vunpack.c.l.bf16 %v1965
      %v2096 = vunpack.c.l.bf16 %v1979
      %v2097 = vunpack.c.l.bf16 %v1989
      %v2098 = vunpack.c.l.bf16 %v2003
      %v2099 = vunpack.c.l.bf16 %v2013
      %v2100 = vunpack.c.l.bf16 %v2027
      %v2101 = vunpack.c.l.bf16 %v2037
      %v2102 = vmul.f32 %v2070, %v1588
      %v2103 = vmul.f32 %v2071, %v1590
      %v2104 = vmul.f32 %v2072, %v1592
      %v2105 = vmul.f32 %v2073, %v1594
      %v2106 = vmul.f32 %v2074, %v1596
      %v2107 = vmul.f32 %v2075, %v1598
      %v2108 = vmul.f32 %v2076, %v1600
      %v2109 = vmul.f32 %v2077, %v1602
      %v2110 = vmul.f32 %v2078, %v1604
      %v2111 = vmul.f32 %v2079, %v1606
      %v2112 = vmul.f32 %v2080, %v1608
      %v2113 = vmul.f32 %v2081, %v1610
      %v2114 = vmul.f32 %v2082, %v1612
      %v2115 = vmul.f32 %v2083, %v1614
      %v2116 = vmul.f32 %v2084, %v1616
      %v2117 = vmul.f32 %v2085, %v1618
      %v2118 = vmul.f32 %v2086, %v1620
      %v2119 = vmul.f32 %v2087, %v1622
      %v2120 = vmul.f32 %v2088, %v1624
      %v2121 = vmul.f32 %v2089, %v1626
      %v2122 = vmul.f32 %v2090, %v1628
      %v2123 = vmul.f32 %v2091, %v1630
      %v2124 = vmul.f32 %v2092, %v1632
      %v2125 = vmul.f32 %v2093, %v1634
      %v2126 = vmul.f32 %v2094, %v1636
      %v2127 = vmul.f32 %v2095, %v1638
      %v2128 = vmul.f32 %v2096, %v1640
      %v2129 = vmul.f32 %v2097, %v1642
      %v2130 = vmul.f32 %v2098, %v1644
      %v2131 = vmul.f32 %v2099, %v1646
      %v2132 = vmul.f32 %v2100, %v1648
      %v2133 = vmul.f32 %v2101, %v1650
      %2134 = vst.msk [vmem:[%s201] sm:$0xff] %vm692, %v2102
      %2135 = vst.msk [vmem:[%s201 + $0x8] sm:$0xff] %vm692, %v2103
      %2136 = vst.msk [vmem:[%s201 + $0x10] sm:$0xff] %vm692, %v2104
      %2137 = vst.msk [vmem:[%s201 + $0x18] sm:$0xff] %vm692, %v2105
      %2138 = vst.msk [vmem:[%s201 + $0x20] sm:$0xff] %vm692, %v2106
      %2139 = vst.msk [vmem:[%s201 + $0x28] sm:$0xff] %vm692, %v2107
      %2140 = vst.msk [vmem:[%s201 + $0x30] sm:$0xff] %vm692, %v2108
      %2141 = vst.msk [vmem:[%s201 + $0x38] sm:$0xff] %vm692, %v2109
      %2142 = vst.msk [vmem:[%s201 + $0x40] sm:$0xff] %vm692, %v2110
      %2143 = vst.msk [vmem:[%s201 + $0x48] sm:$0xff] %vm692, %v2111
      %2144 = vst.msk [vmem:[%s201 + $0x50] sm:$0xff] %vm692, %v2112
      %2145 = vst.msk [vmem:[%s201 + $0x58] sm:$0xff] %vm692, %v2113
      %2146 = vst.msk [vmem:[%s201 + $0x60] sm:$0xff] %vm692, %v2114
      %2147 = vst.msk [vmem:[%s201 + $0x68] sm:$0xff] %vm692, %v2115
      %2148 = vst.msk [vmem:[%s201 + $0x70] sm:$0xff] %vm692, %v2116
      %2149 = vst.msk [vmem:[%s201 + $0x78] sm:$0xff] %vm692, %v2117
      %2150 = vst.msk [vmem:[%s201 + $0x80] sm:$0xff] %vm692, %v2118
      %2151 = vst.msk [vmem:[%s201 + $0x88] sm:$0xff] %vm692, %v2119
      %2152 = vst.msk [vmem:[%s201 + $0x90] sm:$0xff] %vm692, %v2120
      %2153 = vst.msk [vmem:[%s201 + $0x98] sm:$0xff] %vm692, %v2121
      %2154 = vst.msk [vmem:[%s201 + $0xa0] sm:$0xff] %vm692, %v2122
      %2155 = vst.msk [vmem:[%s201 + $0xa8] sm:$0xff] %vm692, %v2123
      %2156 = vst.msk [vmem:[%s201 + $0xb0] sm:$0xff] %vm692, %v2124
      %2157 = vst.msk [vmem:[%s201 + $0xb8] sm:$0xff] %vm692, %v2125
      %2158 = vst.msk [vmem:[%s201 + $0xc0] sm:$0xff] %vm692, %v2126
      %2159 = vst.msk [vmem:[%s201 + $0xc8] sm:$0xff] %vm692, %v2127
      %2160 = vst.msk [vmem:[%s201 + $0xd0] sm:$0xff] %vm692, %v2128
      %2161 = vst.msk [vmem:[%s201 + $0xd8] sm:$0xff] %vm692, %v2129
      %2162 = vst.msk [vmem:[%s201 + $0xe0] sm:$0xff] %vm692, %v2130
      %2163 = vst.msk [vmem:[%s201 + $0xe8] sm:$0xff] %vm692, %v2131
      %2164 = vst.msk [vmem:[%s201 + $0xf0] sm:$0xff] %vm692, %v2132
      %2165 = vst.msk [vmem:[%s201 + $0xf8] sm:$0xff] %vm692, %v2133
      %s2166 = smul.u32 16, %s19
      %p2167 = scmp.lt.s32.totalorder %s18, 1
      %s2168 = scalar_select %p2167, %s18, 1
      %p2169 = scmp.lt.s32.totalorder %s2166, 15
      %s2170 = scalar_select %p2169, %s2166, 15
      %s2171 = smul.addr %s2170, 2
      %s2172 = smul.addr %s2168, 32
      %s2173 = sadd.s32 %s2171, %s2172
      %s2174 = smul.addr %s2173, 8
      %s2175 = scalar_lea.vmem %s3, %s2174
      // Predicated region
      $region33: #{wgb_forward.1} parent=31 // pred_check
        %p2176 = pneg %p116
      $region34: #{wgb_forward.1} parent=31 // pred_check_branch
        %2178 = sbr.rel (%p2176) target = $region36
      $region35: #{wgb_forward.1} parent=31 // pred_region
        %s2179 = smul.u32 16, %s19
      $region36: #{wgb_forward.1} parent=31 // pred_fallthru
        _
    $region32: #{wgb_forward.1} parent=5 // pred_fallthru
      _
    %p2180 = scmp.le.s32.totalorder 2, %s9
    // Predicated region
    $region37: #{wgb_forward.1} parent=5 // pred_check
      %p2181 = pneg %p2180
    $region38: #{wgb_forward.1} parent=5 // pred_check_branch
      %2183 = sbr.rel (%p2181) target = $region40
    $region39: #{wgb_forward.1} parent=5 // pred_region
      %s2184 = ssub.s32 %s9, 2
      // Predicated region
      $region41: #{wgb_forward.1} parent=39 // pred_check
        %p2185 = pneg %p122
      $region42: #{wgb_forward.1} parent=39 // pred_check_branch
        %2187 = sbr.rel (%p2185) target = $region44
      $region43: #{wgb_forward.1} parent=39 // pred_region
        %s2188 = smul.u32 16, %s21
        %p2189 = scmp.lt.s32.totalorder %s20, 1
        %s2190 = scalar_select %p2189, %s20, 1
        %p2191 = scmp.lt.s32.totalorder %s2188, 15
        %s2192 = scalar_select %p2191, %s2188, 15
        %s2193 = smul.addr %s2192, 2
        %s2194 = smul.addr %s2190, 32
        %s2195 = sadd.s32 %s2193, %s2194
        %s2196 = smul.addr %s2195, 8
        %s2197 = scalar_lea.vmem %s3, %s2196
      $region44: #{wgb_forward.1} parent=39 // pred_fallthru
        _
    $region40: #{wgb_forward.1} parent=5 // pred_fallthru
      _
  $region6: #{wgb_forward.1} parent=0 // loop_footer
    %s13 = sadd.s32 1, %s9
  $region7: #{wgb_forward.1} parent=0 // loop_footer_branch
    %8 = sbr.rel target = $region3
  $region8: #{wgb_forward.1} parent=0 // loop_exit
    _

</llo_original>
